<compile_context>
chip_gen: v5e
topology: v5e:2x2
jax: 0.10.0
libtpu: 0.0.40
codegen_flags: <defaults>
</compile_context>

<pallas_src>
import math

import jax
import jax.numpy as jnp
from jax import lax
from jax.experimental import pallas as pl
from jax.experimental.pallas import tpu as pltpu

block_size = 8          # max sequence length (causal mask size)
n_embed = 384           # embedding dim C
head_size = 64          # attention head dim


def head_kernel(x_ref, wqkv_ref, o_ref):
    # x_ref:    (block_b, T, C) tile of activations (bf16 or f32)
    # wqkv_ref: (C, 3H) fused [q | k | v] weights (scale already folded into q cols)
    # o_ref:    (block_b, T, H) output tile
    Bt, T, C = x_ref.shape
    H = o_ref.shape[-1]

    # One fused projection matmul: (Bt*T, C) @ (C, 3H) -> (Bt*T, 3H), f32 accumulation.
    x2d = x_ref[...].reshape(Bt * T, C)
    qkv = jnp.dot(x2d, wqkv_ref[...], preferred_element_type=jnp.float32)
    qkv = qkv.reshape(Bt, T, 3 * H)
    q = qkv[:, :, 0 * H:1 * H]          # already scaled by C**-0.5 via the weights
    k = qkv[:, :, 1 * H:2 * H]
    v = qkv[:, :, 2 * H:3 * H]

    # Batched attention scores without an explicit transpose: (Bt, T, T)
    wei = jnp.einsum('bqd,bkd->bqk', q, k, preferred_element_type=jnp.float32)

    # Causal mask: positions j > i get -inf  (== tril[:T,:T] == 0 masked_fill).
    row = lax.broadcasted_iota(jnp.int32, (T, T), 0)
    col = lax.broadcasted_iota(jnp.int32, (T, T), 1)
    wei = jnp.where((col <= row)[None, :, :], wei, -jnp.inf)

    # Numerically-stable softmax; reciprocal goes to the EUP slot (approx=True).
    wei = wei - jnp.max(wei, axis=-1, keepdims=True)
    p = jnp.exp(wei)
    p = p * pl.reciprocal(jnp.sum(p, axis=-1, keepdims=True), approx=True)

    # Dropout: identity in eval mode.

    out = jnp.einsum('bqk,bkd->bqd', p, v, preferred_element_type=jnp.float32)
    o_ref[...] = out.astype(o_ref.dtype)


def fuse_head_weights(wk, wq, wv, *, compute_dtype=jnp.bfloat16):
    """Build the fused (C, 3H) [q|k|v] weight ONCE (host/setup time, not per call).

    The attention scale C**-0.5 is folded into the q columns, and the operands are cast
    to the MXU compute dtype (bf16 recommended on v5e/v6e/v7x; f32 for bit-closer parity).
    """
    C = wq.shape[0]
    scale = jnp.float32(C) ** -0.5
    w_qkv = jnp.concatenate(
        [wq.astype(jnp.float32) * scale,
         wk.astype(jnp.float32),
         wv.astype(jnp.float32)], axis=1)                       # (C, 3H)
    return w_qkv.astype(compute_dtype)


def _pick_block_b(B, T, *, max_m=2048):
    """Batch rows per grid step.

    ceil(B/2) keeps the grid length >= 2 so v7x's two TensorCores both get work
    (dimension_semantics=("parallel",)), while making each step's projection
    M = block_b * T as large as possible (amortizes ~0.35us/step and fills MXU rows).
    Capped so per-step M stays bounded for very large B.
    """
    if B <= 1:
        return 1
    cap = max(1, max_m // T)
    return min(-(-B // 2), cap)


def head_forward(x, w_qkv_fused, *, block_b=None, out_dtype=None):
    """x: (B, T, C); w_qkv_fused: (C, 3H) from fuse_head_weights -> (B, T, H)."""
    B, T, C = x.shape
    H = w_qkv_fused.shape[1] // 3
    compute_dtype = w_qkv_fused.dtype
    out_dtype = out_dtype or x.dtype

    # Cast activations to the MXU compute dtype (bf16 halves the dominant HBM read).
    x_c = x.astype(compute_dtype)

    if block_b is None:
        block_b = _pick_block_b(B, T)

    # Robust tail handling: pad the batch up to a multiple of block_b (zero rows are
    # harmless: causal softmax row 0 is a single unmasked element, v = 0 -> out = 0),
    # then slice the result back.  Avoids the silent block_b=1 (M=8) worst case.
    B_pad = -(-B // block_b) * block_b
    if B_pad != B:
        x_c = jnp.pad(x_c, ((0, B_pad - B), (0, 0), (0, 0)))
    grid = (B_pad // block_b,)

    out = pl.pallas_call(
        head_kernel,
        out_shape=jax.ShapeDtypeStruct((B_pad, T, H), out_dtype),
        grid_spec=pltpu.PrefetchScalarGridSpec(
            num_scalar_prefetch=0,
            grid=grid,
            in_specs=[
                pl.BlockSpec((block_b, T, C), lambda b: (b, 0, 0)),
                pl.BlockSpec((C, 3 * H), lambda b: (0, 0)),
            ],
            out_specs=pl.BlockSpec((block_b, T, H), lambda b: (b, 0, 0)),
        ),
        compiler_params=pltpu.CompilerParams(
            dimension_semantics=("parallel",)),
    )(x_c, w_qkv_fused)

    if B_pad != B:
        out = out[:B]
    return out


def head_attention(x, wk, wq, wv, *, compute_dtype=jnp.bfloat16, block_b=None):
    """Convenience wrapper matching the old API (fuses weights per call — prefer
    fuse_head_weights + head_forward when calling repeatedly)."""
    w = fuse_head_weights(wk, wq, wv, compute_dtype=compute_dtype)
    return head_forward(x, w, block_b=block_b)


def head_reference(x, wk, wq, wv):
    """Plain-JAX reference mirroring the PyTorch forward (eval mode)."""
    B, T, C = x.shape
    k = x @ wk
    q = x @ wq
    v = x @ wv
    wei = (q @ jnp.swapaxes(k, -2, -1)) * (C ** -0.5)
    tril = jnp.tril(jnp.ones((T, T), dtype=bool))
    wei = jnp.where(tril, wei, -jnp.inf)
    wei = jax.nn.softmax(wei, axis=-1)
    return wei @ v


if __name__ == "__main__":
    key = jax.random.PRNGKey(0)
    kx, kk, kq, kv = jax.random.split(key, 4)

    B, T, C, H = 32, block_size, n_embed, head_size   # B=32 -> block_b=16, grid=(2,)

    x = jax.random.normal(kx, (B, T, C), dtype=jnp.float32)
    # Deterministic nn.Linear-style init (uniform in +/- 1/sqrt(fan_in)), stored as (C, H).
    bound = 1.0 / math.sqrt(C)
    wk = jax.random.uniform(kk, (C, H), jnp.float32, -bound, bound)
    wq = jax.random.uniform(kq, (C, H), jnp.float32, -bound, bound)
    wv = jax.random.uniform(kv, (C, H), jnp.float32, -bound, bound)

    ref = head_reference(x, wk, wq, wv)

    # Default inference path: bf16 operands, weights fused ONCE and reused.
    w_bf16 = fuse_head_weights(wk, wq, wv, compute_dtype=jnp.bfloat16)
    out_bf16 = head_forward(x, w_bf16)
    jax.block_until_ready(out_bf16)
    assert out_bf16.shape == (B, T, H)
    assert jnp.allclose(out_bf16, ref, atol=5e-2, rtol=5e-2), "bf16 mismatch vs reference"

    # Opt-in f32 parity path (matches PyTorch numerics up to approx-reciprocal error).
    w_f32 = fuse_head_weights(wk, wq, wv, compute_dtype=jnp.float32)
    out_f32 = head_forward(x, w_f32)
    jax.block_until_ready(out_f32)
    assert out_f32.shape == (B, T, H)
    assert jnp.allclose(out_f32, ref, atol=5e-3, rtol=5e-3), "f32 mismatch vs reference"

    # Odd batch: exercises the pad-to-multiple-of-block_b path (no block_b=1 fallback).
    B_odd = 5
    out_odd = head_forward(x[:B_odd], w_f32)
    jax.block_until_ready(out_odd)
    assert out_odd.shape == (B_odd, T, H)
    assert jnp.allclose(out_odd, ref[:B_odd], atol=5e-3, rtol=5e-3), "padded-batch mismatch"

    print("KERNEL_OK")
</pallas_src>

<mosaic_0001>
module attributes {stable_mosaic.version = 11 : i64} {
  func.func @head_kernel(%arg0: i32, %arg1: memref<16x8x384xbf16, #tpu.memory_space<vmem>>, %arg2: memref<384x192xbf16, #tpu.memory_space<vmem>>, %arg3: memref<16x8x64xf32, #tpu.memory_space<vmem>>) attributes {dimension_semantics = [#tpu.dimension_semantics<parallel>], iteration_bounds = array<i64: 2>, scalar_prefetch = 0 : i64, scratch_operands = 0 : i64, tpu.core_type = #tpu.core_type<tc>, window_params = [{transform_indices = @transform_0, window_bounds = array<i64: 16, 8, 384>}, {pipeline_mode = #tpu.pipeline_mode<synchronous>, transform_indices = @transform_1, window_bounds = array<i64: 384, 192>}, {transform_indices = @transform_2, window_bounds = array<i64: 16, 8, 64>}]} {
    %c0 = arith.constant 0 : index
    %c0_0 = arith.constant 0 : index
    %c0_1 = arith.constant 0 : index
    %0 = vector.load %arg1[%c0, %c0_0, %c0_1] : memref<16x8x384xbf16, #tpu.memory_space<vmem>>, vector<16x8x384xbf16>
    %1 = vector.shape_cast %0 : vector<16x8x384xbf16> to vector<128x384xbf16>
    %c0_2 = arith.constant 0 : index
    %c0_3 = arith.constant 0 : index
    %2 = vector.load %arg2[%c0_2, %c0_3] : memref<384x192xbf16, #tpu.memory_space<vmem>>, vector<384x192xbf16>
    %cst = arith.constant dense<0.000000e+00> : vector<128x192xf32>
    %3 = tpu.matmul %1, %2, %cst {dimension_numbers = #tpu.dot_dimension_numbers<[1], [0], [0], [1], [0, 0, 1, 1], [], []>} : vector<128x384xbf16>, vector<384x192xbf16>, vector<128x192xf32> -> vector<128x192xf32>
    %4 = vector.shape_cast %3 : vector<128x192xf32> to vector<16x8x192xf32>
    %5 = vector.extract_strided_slice %4 {offsets = [0, 0, 0], sizes = [16, 8, 64], strides = [1, 1, 1]} : vector<16x8x192xf32> to vector<16x8x64xf32>
    %6 = vector.extract_strided_slice %4 {offsets = [0, 0, 64], sizes = [16, 8, 64], strides = [1, 1, 1]} : vector<16x8x192xf32> to vector<16x8x64xf32>
    %7 = vector.extract_strided_slice %4 {offsets = [0, 0, 128], sizes = [16, 8, 64], strides = [1, 1, 1]} : vector<16x8x192xf32> to vector<16x8x64xf32>
    "tpu.trace_start"() <{level = 10 : i32, message = "bqd,bkd->bqk"}> : () -> ()
    %cst_4 = arith.constant dense<0.000000e+00> : vector<16x8x8xf32>
    %8 = tpu.matmul %5, %6, %cst_4 {dimension_numbers = #tpu.dot_dimension_numbers<[2], [2], [1], [1], [0, 0, 0, 1, 1, 1], [0], [0]>} : vector<16x8x64xf32>, vector<16x8x64xf32>, vector<16x8x8xf32> -> vector<16x8x8xf32>
    "tpu.trace_stop"() : () -> ()
    %9 = tpu.iota {dimensions = array<i32: 0>} : vector<8x8xi32>
    %10 = tpu.iota {dimensions = array<i32: 1>} : vector<8x8xi32>
    %11 = arith.cmpi sle, %10, %9 : vector<8x8xi32>
    %12 = vector.shape_cast %11 : vector<8x8xi1> to vector<1x8x8xi1>
    %cst_5 = arith.constant 0xFF800000 : f32
    %13 = vector.shape_cast %12 : vector<1x8x8xi1> to vector<1x8x8xi1>
    %14 = vector.broadcast %13 : vector<1x8x8xi1> to vector<16x8x8xi1>
    %15 = vector.broadcast %cst_5 : f32 to vector<16x8x8xf32>
    %16 = arith.select %14, %8, %15 : vector<16x8x8xi1>, vector<16x8x8xf32>
    %cst_6 = arith.constant dense<0xFF800000> : vector<16x8xf32>
    %17 = vector.multi_reduction <maximumf>, %16, %cst_6 [2] : vector<16x8x8xf32> to vector<16x8xf32>
    %18 = vector.shape_cast %17 : vector<16x8xf32> to vector<16x8x1xf32>
    %19 = vector.broadcast %18 : vector<16x8x1xf32> to vector<16x8x8xf32>
    %20 = arith.subf %16, %19 : vector<16x8x8xf32>
    %21 = math.exp %20 : vector<16x8x8xf32>
    %cst_7 = arith.constant dense<0.000000e+00> : vector<16x8xf32>
    %22 = vector.multi_reduction <add>, %21, %cst_7 [2] : vector<16x8x8xf32> to vector<16x8xf32>
    %23 = vector.shape_cast %22 : vector<16x8xf32> to vector<16x8x1xf32>
    %24 = tpu.reciprocal %23 {approx = true} : vector<16x8x1xf32> -> vector<16x8x1xf32>
    %25 = vector.broadcast %24 : vector<16x8x1xf32> to vector<16x8x8xf32>
    %26 = arith.mulf %21, %25 : vector<16x8x8xf32>
    "tpu.trace_start"() <{level = 10 : i32, message = "bqk,bkd->bqd"}> : () -> ()
    %cst_8 = arith.constant dense<0.000000e+00> : vector<16x8x64xf32>
    %27 = tpu.matmul %26, %7, %cst_8 {dimension_numbers = #tpu.dot_dimension_numbers<[2], [1], [1], [2], [0, 0, 0, 1, 1, 2], [0], [0]>} : vector<16x8x8xf32>, vector<16x8x64xf32>, vector<16x8x64xf32> -> vector<16x8x64xf32>
    "tpu.trace_stop"() : () -> ()
    %c0_9 = arith.constant 0 : index
    %c0_10 = arith.constant 0 : index
    %c0_11 = arith.constant 0 : index
    %28 = vector.load %arg3[%c0_9, %c0_10, %c0_11] : memref<16x8x64xf32, #tpu.memory_space<vmem>>, vector<16x8x64xf32>
    tpu.vector_store %arg3[%c0_9, %c0_10, %c0_11], %27 {strides = array<i32>} : memref<16x8x64xf32, #tpu.memory_space<vmem>>, vector<16x8x64xf32>,
    return
  }
  func.func @transform_0(%arg0: i32) -> (i32, i32, i32) {
    %c0_i32 = arith.constant 0 : i32
    %c0_i32_0 = arith.constant 0 : i32
    %c0_i32_1 = arith.constant 0 : i32
    return %arg0, %c0_i32, %c0_i32_0 : i32, i32, i32
  }
  func.func @transform_1(%arg0: i32) -> (i32, i32) {
    %c0_i32 = arith.constant 0 : i32
    %c0_i32_0 = arith.constant 0 : i32
    %c0_i32_1 = arith.constant 0 : i32
    return %c0_i32, %c0_i32_0 : i32, i32
  }
  func.func @transform_2(%arg0: i32) -> (i32, i32, i32) {
    %c0_i32 = arith.constant 0 : i32
    %c0_i32_0 = arith.constant 0 : i32
    %c0_i32_1 = arith.constant 0 : i32
    return %arg0, %c0_i32, %c0_i32_0 : i32, i32, i32
  }
}

</mosaic_0001>

<llo_original>
// kernel: tpu_custom_call.1
$region0: #{tpu_custom_call.1}
  #allocation0 [shape = 'u32[]', space=smem, size = 0x4, offset = 0x4, fixed_abs, tag = 'smem constant byte address 0x4 - core index']
  #allocation1 [shape = 'u32[72,128]{1,0:T(1,128)}', space=vmem, size = 0x9000, scoped, tag = 'internal scratch']
  %s0 = inlined_call_operand.vmem [shape: bf16[32,8,384], index: 0, kind: input, shape index: {}]
  %s1 = inlined_call_operand.vmem [shape: bf16[384,192], index: 1, kind: input, shape index: {}]
  %s2 = inlined_call_operand.hbm [shape: f32[32,8,64], index: 2, kind: output, shape index: {}]
  %s3 = sld [smem:[#allocation0]]
  $region41: #{tpu_custom_call.1} parent=0
    _
  %s5 = ssub.s32 1, %s3
  %s6 = scalar_select 0, %s5, %s3
  $region1: #{tpu_custom_call.1} parent=0
    #allocation2 [shape = 'u8[131072]{0}', space=vmem, size = 0x20000, scoped, tag = 'output window, operand 0']
    #allocation3 [shape = 's32[2]{0}', space=sflag, size = 0x8, scoped, tag = 'scoped memory for tpu_custom_call.1']
    %7 = vsyncpa [#allocation3], 0
    %s8 = scalar_lea.sflag [#allocation3], 1
    %9 = vsyncpa %s8, 0
    loop: start=0, step=1, limit=4
    $region2: #{tpu_custom_call.1} parent=1 // loop_pre_header
      _
    $region3: #{tpu_custom_call.1} parent=1 // loop_header
      %s11 = sphi 0, %s15
      %p12 = scmp.ge.s32.totalorder %s11, 4
      %s21 = sphi 0, %s23
      %s24 = sphi 0, %s21
      %s25 = sphi 0, %s24
      %s41 = sphi 0, %s25
      %s45 = sphi 0, %s45
      %s47 = sphi 0, %s45
      %s48 = sphi 0, %s47
      %s62 = sphi 0, %s48
      %s68 = sphi 0, %s70
      %s71 = sphi 0, %s68
      %s72 = sphi 0, %s71
      %s88 = sphi 0, %s72
    $region4: #{tpu_custom_call.1} parent=1 // loop_header_branch
      %14 = sbr.rel (%p12) target = $region8
    $region5: #{tpu_custom_call.1} parent=1 // loop_body
      %s16 = ssub.s32 %s11, 1
      %s17 = ssub.s32 %s11, 2
      %s18 = sadd.s32 %s11, 1
      %s19 = ssub.s32 %s11, %s18
      %p20 = scmp.eq.s32.totalorder %s19, 0
      %s22 = sadd.s32 %s21, 1
      %s23 = scalar_select %p20, %s21, %s22
      %p26 = pneg %p20
      %p27 = scmp.eq.s32.totalorder %s11, 1
      %p28 = por %p26, %p27
      %p29 = scmp.ne.s32.totalorder %s21, %s24
      %p30 = scmp.eq.s32.totalorder %s11, 0
      %p31 = por %p29, %p30
      %p32 = scmp.ne.s32.totalorder %s21, %s24
      %p33 = scmp.eq.s32.totalorder %s16, 1
      %p34 = por %p32, %p33
      %p35 = scmp.ne.s32.totalorder %s24, %s25
      %p36 = scmp.eq.s32.totalorder %s16, 0
      %p37 = por %p35, %p36
      %p38 = scmp.ne.s32.totalorder %s24, %s25
      %p39 = scmp.eq.s32.totalorder %s17, 1
      %p40 = por %p38, %p39
      %p42 = scmp.ne.s32.totalorder %s25, %s41
      %p43 = scmp.eq.s32.totalorder %s17, 0
      %p44 = por %p42, %p43
      %s46 = sadd.s32 %s45, 1
      %p49 = scmp.eq.s32.totalorder %s11, 1
      %p50 = scmp.ne.s32.totalorder %s45, %s47
      %p51 = scmp.eq.s32.totalorder %s11, 0
      %p52 = por %p50, %p51
      %p53 = scmp.ne.s32.totalorder %s45, %s47
      %p54 = scmp.eq.s32.totalorder %s16, 1
      %p55 = por %p53, %p54
      %p56 = scmp.ne.s32.totalorder %s47, %s48
      %p57 = scmp.eq.s32.totalorder %s16, 0
      %p58 = por %p56, %p57
      %p59 = scmp.ne.s32.totalorder %s47, %s48
      %p60 = scmp.eq.s32.totalorder %s17, 1
      %p61 = por %p59, %p60
      %p63 = scmp.ne.s32.totalorder %s48, %s62
      %p64 = scmp.eq.s32.totalorder %s17, 0
      %p65 = por %p63, %p64
      %s66 = ssub.s32 %s11, %s18
      %p67 = scmp.eq.s32.totalorder %s66, 0
      %s69 = sadd.s32 %s68, 1
      %s70 = scalar_select %p67, %s68, %s69
      %p73 = pneg %p67
      %p74 = scmp.eq.s32.totalorder %s11, 1
      %p75 = por %p73, %p74
      %p76 = scmp.ne.s32.totalorder %s68, %s71
      %p77 = scmp.eq.s32.totalorder %s11, 0
      %p78 = por %p76, %p77
      %p79 = scmp.ne.s32.totalorder %s68, %s71
      %p80 = scmp.eq.s32.totalorder %s16, 1
      %p81 = por %p79, %p80
      %p82 = scmp.ne.s32.totalorder %s71, %s72
      %p83 = scmp.eq.s32.totalorder %s16, 0
      %p84 = por %p82, %p83
      %p85 = scmp.ne.s32.totalorder %s71, %s72
      %p86 = scmp.eq.s32.totalorder %s17, 1
      %p87 = por %p85, %p86
      %p89 = scmp.ne.s32.totalorder %s72, %s88
      %p90 = scmp.eq.s32.totalorder %s17, 0
      %p91 = por %p89, %p90
      %p92 = scmp.le.s32.totalorder 1, %s11
      %p93 = scmp.lt.s32.totalorder %s11, 3
      %p94 = pnand %p92, %p93
      %p95 = pneg %p94
      // Predicated region
      $region9: #{tpu_custom_call.1} parent=5 // pred_check
        _
      $region10: #{tpu_custom_call.1} parent=5 // pred_check_branch
        %97 = sbr.rel (%p94) target = $region12
      $region11: #{tpu_custom_call.1} parent=5 // pred_region
        %s98 = ssub.s32 %s11, 1
        // Predicated region
        $region13: #{tpu_custom_call.1} parent=11 // pred_check
          %p99 = pneg %p58
        $region14: #{tpu_custom_call.1} parent=11 // pred_check_branch
          %101 = sbr.rel (%p99) target = $region16
        $region15: #{tpu_custom_call.1} parent=11 // pred_region
          _
        $region16: #{tpu_custom_call.1} parent=11 // pred_fallthru
          _
      $region12: #{tpu_custom_call.1} parent=5 // pred_fallthru
        _
      %p102 = scmp.lt.s32.totalorder %s11, 2
      // Predicated region
      $region17: #{tpu_custom_call.1} parent=5 // pred_check
        %p103 = pneg %p102
      $region18: #{tpu_custom_call.1} parent=5 // pred_check_branch
        %105 = sbr.rel (%p103) target = $region20
      $region19: #{tpu_custom_call.1} parent=5 // pred_region
        // Predicated region
        $region21: #{tpu_custom_call.1} parent=19 // pred_check
          %p106 = pneg %p31
        $region22: #{tpu_custom_call.1} parent=19 // pred_check_branch
          %108 = sbr.rel (%p106) target = $region24
        $region23: #{tpu_custom_call.1} parent=19 // pred_region
          %s109 = smul.u32 16, %s11
          %p110 = scmp.lt.s32.totalorder %s109, 31
          %s111 = scalar_select %p110, %s109, 31
          %s112 = smul.addr %s111, 3
          %s113 = smul.addr %s112, 4
          %s114 = scalar_lea.vmem %s0, %s113
          %s115 = smul.u32 16, %s11
        $region24: #{tpu_custom_call.1} parent=19 // pred_fallthru
          _
      $region20: #{tpu_custom_call.1} parent=5 // pred_fallthru
        _
      %p116 = scmp.le.s32.totalorder 1, %s11
      %p117 = scmp.lt.s32.totalorder %s11, 3
      %p118 = pnand %p116, %p117
      %p119 = pneg %p118
      // Predicated region
      $region25: #{tpu_custom_call.1} parent=5 // pred_check
        _
      $region26: #{tpu_custom_call.1} parent=5 // pred_check_branch
        %121 = sbr.rel (%p118) target = $region28
      $region27: #{tpu_custom_call.1} parent=5 // pred_region
        %s122 = ssub.s32 %s11, 1
        %s123 = smul.u32 16, %s16
        %p124 = scmp.lt.s32.totalorder %s123, 31
        %s125 = scalar_select %p124, %s123, 31
        %s126 = smul.addr %s125, 3
        %s127 = smul.addr %s126, 4
        %s128 = scalar_lea.vmem %s0, %s127
        %p129 = pneg %p37
        %p130 = pneg %p34
        %p131 = pneg %p58
        %p132 = pneg %p55
        %p133 = pneg %p84
        %p134 = pneg %p81
        %s135 = sand.u32 %s71, 1
        %s136 = scalar_lea.sflag [#allocation3], %s135
        %s137 = sand.u32 %s71, 1
        %s138 = smul.addr %s137, 128
        %s139 = scalar_lea.vmem [#allocation2], %s138
        %s140 = smul.u32 16, %s16
        %p141 = scmp.lt.s32.totalorder %s140, 31
        %s142 = scalar_select %p141, %s140, 31
        %s143 = smul.addr %s142, 3
        %s144 = smul.addr %s143, 4
        %s145 = scalar_lea.vmem %s0, %s144
        %s146 = smul.u32 16, %s16
        %s147 = smul.u32 16, %s16
        %v148 = vld [vmem:[%s145] sm:$0xff]
        %v149 = vld [vmem:[%s145 + $0x8] sm:$0xf]
        %v150 = vld [vmem:[%s145 + $0xc] sm:$0xff]
        %v151 = vld [vmem:[%s145 + $0x14] sm:$0xf]
        %v152 = vld [vmem:[%s145 + $0x18] sm:$0xff]
        %v153 = vld [vmem:[%s145 + $0x20] sm:$0xf]
        %v154 = vld [vmem:[%s145 + $0x24] sm:$0xff]
        %v155 = vld [vmem:[%s145 + $0x2c] sm:$0xf]
        %v156 = vld [vmem:[%s145 + $0x30] sm:$0xff]
        %v157 = vld [vmem:[%s145 + $0x38] sm:$0xf]
        %v158 = vld [vmem:[%s145 + $0x3c] sm:$0xff]
        %v159 = vld [vmem:[%s145 + $0x44] sm:$0xf]
        %v160 = vld [vmem:[%s145 + $0x48] sm:$0xff]
        %v161 = vld [vmem:[%s145 + $0x50] sm:$0xf]
        %v162 = vld [vmem:[%s145 + $0x54] sm:$0xff]
        %v163 = vld [vmem:[%s145 + $0x5c] sm:$0xf]
        %v164 = vld [vmem:[%s145 + $0x60] sm:$0xff]
        %v165 = vld [vmem:[%s145 + $0x68] sm:$0xf]
        %v166 = vld [vmem:[%s145 + $0x6c] sm:$0xff]
        %v167 = vld [vmem:[%s145 + $0x74] sm:$0xf]
        %v168 = vld [vmem:[%s145 + $0x78] sm:$0xff]
        %v169 = vld [vmem:[%s145 + $0x80] sm:$0xf]
        %v170 = vld [vmem:[%s145 + $0x84] sm:$0xff]
        %v171 = vld [vmem:[%s145 + $0x8c] sm:$0xf]
        %v172 = vld [vmem:[%s145 + $0x90] sm:$0xff]
        %v173 = vld [vmem:[%s145 + $0x98] sm:$0xf]
        %v174 = vld [vmem:[%s145 + $0x9c] sm:$0xff]
        %v175 = vld [vmem:[%s145 + $0xa4] sm:$0xf]
        %v176 = vld [vmem:[%s145 + $0xa8] sm:$0xff]
        %v177 = vld [vmem:[%s145 + $0xb0] sm:$0xf]
        %v178 = vld [vmem:[%s145 + $0xb4] sm:$0xff]
        %v179 = vld [vmem:[%s145 + $0xbc] sm:$0xf]
        %v180 = vld [vmem:[%s1] sm:$0xff]
        %v181 = vld [vmem:[%s1 + $0x8] sm:$0xff]
        %v182 = vld [vmem:[%s1 + $0x10] sm:$0xff]
        %v183 = vld [vmem:[%s1 + $0x18] sm:$0xff]
        %v184 = vld [vmem:[%s1 + $0x20] sm:$0xff]
        %v185 = vld [vmem:[%s1 + $0x28] sm:$0xff]
        %v186 = vld [vmem:[%s1 + $0x30] sm:$0xff]
        %v187 = vld [vmem:[%s1 + $0x38] sm:$0xff]
        %v188 = vld [vmem:[%s1 + $0x40] sm:$0xff]
        %v189 = vld [vmem:[%s1 + $0x48] sm:$0xff]
        %v190 = vld [vmem:[%s1 + $0x50] sm:$0xff]
        %v191 = vld [vmem:[%s1 + $0x58] sm:$0xff]
        %v192 = vld [vmem:[%s1 + $0x60] sm:$0xff]
        %v193 = vld [vmem:[%s1 + $0x68] sm:$0xff]
        %v194 = vld [vmem:[%s1 + $0x70] sm:$0xff]
        %v195 = vld [vmem:[%s1 + $0x78] sm:$0xff]
        %v196 = vld [vmem:[%s1 + $0x80] sm:$0xff]
        %v197 = vld [vmem:[%s1 + $0x88] sm:$0xff]
        %v198 = vld [vmem:[%s1 + $0x90] sm:$0xff]
        %v199 = vld [vmem:[%s1 + $0x98] sm:$0xff]
        %v200 = vld [vmem:[%s1 + $0xa0] sm:$0xff]
        %v201 = vld [vmem:[%s1 + $0xa8] sm:$0xff]
        %v202 = vld [vmem:[%s1 + $0xb0] sm:$0xff]
        %v203 = vld [vmem:[%s1 + $0xb8] sm:$0xff]
        %v204 = vld [vmem:[%s1 + $0xc0] sm:$0xff]
        %v205 = vld [vmem:[%s1 + $0xc8] sm:$0xff]
        %v206 = vld [vmem:[%s1 + $0xd0] sm:$0xff]
        %v207 = vld [vmem:[%s1 + $0xd8] sm:$0xff]
        %v208 = vld [vmem:[%s1 + $0xe0] sm:$0xff]
        %v209 = vld [vmem:[%s1 + $0xe8] sm:$0xff]
        %v210 = vld [vmem:[%s1 + $0xf0] sm:$0xff]
        %v211 = vld [vmem:[%s1 + $0xf8] sm:$0xff]
        %v212 = vld [vmem:[%s1 + $0x100] sm:$0xff]
        %v213 = vld [vmem:[%s1 + $0x108] sm:$0xff]
        %v214 = vld [vmem:[%s1 + $0x110] sm:$0xff]
        %v215 = vld [vmem:[%s1 + $0x118] sm:$0xff]
        %v216 = vld [vmem:[%s1 + $0x120] sm:$0xff]
        %v217 = vld [vmem:[%s1 + $0x128] sm:$0xff]
        %v218 = vld [vmem:[%s1 + $0x130] sm:$0xff]
        %v219 = vld [vmem:[%s1 + $0x138] sm:$0xff]
        %v220 = vld [vmem:[%s1 + $0x140] sm:$0xff]
        %v221 = vld [vmem:[%s1 + $0x148] sm:$0xff]
        %v222 = vld [vmem:[%s1 + $0x150] sm:$0xff]
        %v223 = vld [vmem:[%s1 + $0x158] sm:$0xff]
        %v224 = vld [vmem:[%s1 + $0x160] sm:$0xff]
        %v225 = vld [vmem:[%s1 + $0x168] sm:$0xff]
        %v226 = vld [vmem:[%s1 + $0x170] sm:$0xff]
        %v227 = vld [vmem:[%s1 + $0x178] sm:$0xff]
        %v260 = vunpack.c.l.b16 %v148
        %v261 = vunpack.c.h.b16 %v148
        %v262 = vunpack.c.l.b16 %v149
        %v263 = vunpack.c.l.b16 %v150
        %v264 = vunpack.c.h.b16 %v150
        %v265 = vunpack.c.l.b16 %v151
        %v266 = vunpack.c.l.b16 %v152
        %v267 = vunpack.c.h.b16 %v152
        %v268 = vunpack.c.l.b16 %v153
        %v269 = vunpack.c.l.b16 %v154
        %v270 = vunpack.c.h.b16 %v154
        %v271 = vunpack.c.l.b16 %v155
        %v272 = vunpack.c.l.b16 %v156
        %v273 = vunpack.c.h.b16 %v156
        %v274 = vunpack.c.l.b16 %v157
        %v275 = vunpack.c.l.b16 %v158
        %v276 = vunpack.c.h.b16 %v158
        %v277 = vunpack.c.l.b16 %v159
        %v278 = vunpack.c.l.b16 %v160
        %v279 = vunpack.c.h.b16 %v160
        %v280 = vunpack.c.l.b16 %v161
        %v281 = vunpack.c.l.b16 %v162
        %v282 = vunpack.c.h.b16 %v162
        %v283 = vunpack.c.l.b16 %v163
        %v284 = vunpack.c.l.b16 %v164
        %v285 = vunpack.c.h.b16 %v164
        %v286 = vunpack.c.l.b16 %v165
        %v287 = vunpack.c.l.b16 %v166
        %v288 = vunpack.c.h.b16 %v166
        %v289 = vunpack.c.l.b16 %v167
        %v290 = vunpack.c.l.b16 %v168
        %v291 = vunpack.c.h.b16 %v168
        %v292 = vunpack.c.l.b16 %v169
        %v293 = vunpack.c.l.b16 %v170
        %v294 = vunpack.c.h.b16 %v170
        %v295 = vunpack.c.l.b16 %v171
        %v296 = vunpack.c.l.b16 %v172
        %v297 = vunpack.c.h.b16 %v172
        %v298 = vunpack.c.l.b16 %v173
        %v299 = vunpack.c.l.b16 %v174
        %v300 = vunpack.c.h.b16 %v174
        %v301 = vunpack.c.l.b16 %v175
        %v302 = vunpack.c.l.b16 %v176
        %v303 = vunpack.c.h.b16 %v176
        %v304 = vunpack.c.l.b16 %v177
        %v305 = vunpack.c.l.b16 %v178
        %v306 = vunpack.c.h.b16 %v178
        %v307 = vunpack.c.l.b16 %v179
        %v308 = vpack.c.b16 %v263, %v260
        %v309 = vpack.c.b16 %v264, %v261
        %v310 = vpack.c.b16 %v265, %v262
        %v311 = vpack.c.b16 %v269, %v266
        %v312 = vpack.c.b16 %v270, %v267
        %v313 = vpack.c.b16 %v271, %v268
        %v314 = vpack.c.b16 %v275, %v272
        %v315 = vpack.c.b16 %v276, %v273
        %v316 = vpack.c.b16 %v277, %v274
        %v317 = vpack.c.b16 %v281, %v278
        %v318 = vpack.c.b16 %v282, %v279
        %v319 = vpack.c.b16 %v283, %v280
        %v320 = vpack.c.b16 %v287, %v284
        %v321 = vpack.c.b16 %v288, %v285
        %v322 = vpack.c.b16 %v289, %v286
        %v323 = vpack.c.b16 %v293, %v290
        %v324 = vpack.c.b16 %v294, %v291
        %v325 = vpack.c.b16 %v295, %v292
        %v326 = vpack.c.b16 %v299, %v296
        %v327 = vpack.c.b16 %v300, %v297
        %v328 = vpack.c.b16 %v301, %v298
        %v329 = vpack.c.b16 %v305, %v302
        %v330 = vpack.c.b16 %v306, %v303
        %v331 = vpack.c.b16 %v307, %v304
        %v404 = vunpack.c.l.b16 %v180
        %v405 = vunpack.c.h.b16 %v180
        %v406 = vunpack.c.l.b16 %v181
        %v407 = vunpack.c.h.b16 %v181
        %v408 = vunpack.c.l.b16 %v182
        %v409 = vunpack.c.h.b16 %v182
        %v410 = vunpack.c.l.b16 %v183
        %v411 = vunpack.c.h.b16 %v183
        %v412 = vunpack.c.l.b16 %v184
        %v413 = vunpack.c.h.b16 %v184
        %v414 = vunpack.c.l.b16 %v185
        %v415 = vunpack.c.h.b16 %v185
        %v416 = vunpack.c.l.b16 %v186
        %v417 = vunpack.c.h.b16 %v186
        %v418 = vunpack.c.l.b16 %v187
        %v419 = vunpack.c.h.b16 %v187
        %v420 = vunpack.c.l.b16 %v188
        %v421 = vunpack.c.h.b16 %v188
        %v422 = vunpack.c.l.b16 %v189
        %v423 = vunpack.c.h.b16 %v189
        %v424 = vunpack.c.l.b16 %v190
        %v425 = vunpack.c.h.b16 %v190
        %v426 = vunpack.c.l.b16 %v191
        %v427 = vunpack.c.h.b16 %v191
        %v428 = vunpack.c.l.b16 %v192
        %v429 = vunpack.c.h.b16 %v192
        %v430 = vunpack.c.l.b16 %v193
        %v431 = vunpack.c.h.b16 %v193
        %v432 = vunpack.c.l.b16 %v194
        %v433 = vunpack.c.h.b16 %v194
        %v434 = vunpack.c.l.b16 %v195
        %v435 = vunpack.c.h.b16 %v195
        %v436 = vunpack.c.l.b16 %v196
        %v437 = vunpack.c.h.b16 %v196
        %v438 = vunpack.c.l.b16 %v197
        %v439 = vunpack.c.h.b16 %v197
        %v440 = vunpack.c.l.b16 %v198
        %v441 = vunpack.c.h.b16 %v198
        %v442 = vunpack.c.l.b16 %v199
        %v443 = vunpack.c.h.b16 %v199
        %v444 = vunpack.c.l.b16 %v200
        %v445 = vunpack.c.h.b16 %v200
        %v446 = vunpack.c.l.b16 %v201
        %v447 = vunpack.c.h.b16 %v201
        %v448 = vunpack.c.l.b16 %v202
        %v449 = vunpack.c.h.b16 %v202
        %v450 = vunpack.c.l.b16 %v203
        %v451 = vunpack.c.h.b16 %v203
        %v452 = vunpack.c.l.b16 %v204
        %v453 = vunpack.c.h.b16 %v204
        %v454 = vunpack.c.l.b16 %v205
        %v455 = vunpack.c.h.b16 %v205
        %v456 = vunpack.c.l.b16 %v206
        %v457 = vunpack.c.h.b16 %v206
        %v458 = vunpack.c.l.b16 %v207
        %v459 = vunpack.c.h.b16 %v207
        %v460 = vunpack.c.l.b16 %v208
        %v461 = vunpack.c.h.b16 %v208
        %v462 = vunpack.c.l.b16 %v209
        %v463 = vunpack.c.h.b16 %v209
        %v464 = vunpack.c.l.b16 %v210
        %v465 = vunpack.c.h.b16 %v210
        %v466 = vunpack.c.l.b16 %v211
        %v467 = vunpack.c.h.b16 %v211
        %v468 = vunpack.c.l.b16 %v212
        %v469 = vunpack.c.h.b16 %v212
        %v470 = vunpack.c.l.b16 %v213
        %v471 = vunpack.c.h.b16 %v213
        %v472 = vunpack.c.l.b16 %v214
        %v473 = vunpack.c.h.b16 %v214
        %v474 = vunpack.c.l.b16 %v215
        %v475 = vunpack.c.h.b16 %v215
        %v476 = vunpack.c.l.b16 %v216
        %v477 = vunpack.c.h.b16 %v216
        %v478 = vunpack.c.l.b16 %v217
        %v479 = vunpack.c.h.b16 %v217
        %v480 = vunpack.c.l.b16 %v218
        %v481 = vunpack.c.h.b16 %v218
        %v482 = vunpack.c.l.b16 %v219
        %v483 = vunpack.c.h.b16 %v219
        %v484 = vunpack.c.l.b16 %v220
        %v485 = vunpack.c.h.b16 %v220
        %v486 = vunpack.c.l.b16 %v221
        %v487 = vunpack.c.h.b16 %v221
        %v488 = vunpack.c.l.b16 %v222
        %v489 = vunpack.c.h.b16 %v222
        %v490 = vunpack.c.l.b16 %v223
        %v491 = vunpack.c.h.b16 %v223
        %v492 = vunpack.c.l.b16 %v224
        %v493 = vunpack.c.h.b16 %v224
        %v494 = vunpack.c.l.b16 %v225
        %v495 = vunpack.c.h.b16 %v225
        %v496 = vunpack.c.l.b16 %v226
        %v497 = vunpack.c.h.b16 %v226
        %v498 = vunpack.c.l.b16 %v227
        %v499 = vunpack.c.h.b16 %v227
        %v500 = vpack.c.b16 %v406, %v404
        %v501 = vpack.c.b16 %v407, %v405
        %v502 = vpack.c.b16 %v410, %v408
        %v503 = vpack.c.b16 %v411, %v409
        %v504 = vpack.c.b16 %v414, %v412
        %v505 = vpack.c.b16 %v415, %v413
        %v506 = vpack.c.b16 %v418, %v416
        %v507 = vpack.c.b16 %v419, %v417
        %v508 = vpack.c.b16 %v422, %v420
        %v509 = vpack.c.b16 %v423, %v421
        %v510 = vpack.c.b16 %v426, %v424
        %v511 = vpack.c.b16 %v427, %v425
        %v512 = vpack.c.b16 %v430, %v428
        %v513 = vpack.c.b16 %v431, %v429
        %v514 = vpack.c.b16 %v434, %v432
        %v515 = vpack.c.b16 %v435, %v433
        %v516 = vpack.c.b16 %v438, %v436
        %v517 = vpack.c.b16 %v439, %v437
        %v518 = vpack.c.b16 %v442, %v440
        %v519 = vpack.c.b16 %v443, %v441
        %v520 = vpack.c.b16 %v446, %v444
        %v521 = vpack.c.b16 %v447, %v445
        %v522 = vpack.c.b16 %v450, %v448
        %v523 = vpack.c.b16 %v451, %v449
        %v524 = vpack.c.b16 %v454, %v452
        %v525 = vpack.c.b16 %v455, %v453
        %v526 = vpack.c.b16 %v458, %v456
        %v527 = vpack.c.b16 %v459, %v457
        %v528 = vpack.c.b16 %v462, %v460
        %v529 = vpack.c.b16 %v463, %v461
        %v530 = vpack.c.b16 %v466, %v464
        %v531 = vpack.c.b16 %v467, %v465
        %v532 = vpack.c.b16 %v470, %v468
        %v533 = vpack.c.b16 %v471, %v469
        %v534 = vpack.c.b16 %v474, %v472
        %v535 = vpack.c.b16 %v475, %v473
        %v536 = vpack.c.b16 %v478, %v476
        %v537 = vpack.c.b16 %v479, %v477
        %v538 = vpack.c.b16 %v482, %v480
        %v539 = vpack.c.b16 %v483, %v481
        %v540 = vpack.c.b16 %v486, %v484
        %v541 = vpack.c.b16 %v487, %v485
        %v542 = vpack.c.b16 %v490, %v488
        %v543 = vpack.c.b16 %v491, %v489
        %v544 = vpack.c.b16 %v494, %v492
        %v545 = vpack.c.b16 %v495, %v493
        %v546 = vpack.c.b16 %v498, %v496
        %v547 = vpack.c.b16 %v499, %v497
        %596 = vmatpush.bf16.msra.mxu0 %v514
        %597 = vmatpush.bf16.msra.mxu0 %v512
        %598 = vmatpush.bf16.msra.mxu0 %v510
        %599 = vmatpush.bf16.msra.mxu0 %v508
        %600 = vmatpush.bf16.msra.mxu0 %v506
        %601 = vmatpush.bf16.msra.mxu0 %v504
        %602 = vmatpush.bf16.msra.mxu0 %v502
        %603 = vmatpush.bf16.msra.mxu0 %v500
        %604 = vmatmul.bf16.gmra.mxu0 %v308
        %v605 = vpop.f32.mrf.mxu0
        %v606 = vadd.f32 0.0, %v605
        %v607 = vpop.f32.mrf.mxu0
        %v608 = vadd.f32 0.0, %v607
        %609 = vmatmul.bf16.gmra.mxu0 %v311
        %v610 = vpop.f32.mrf.mxu0
        %v611 = vadd.f32 0.0, %v610
        %v612 = vpop.f32.mrf.mxu0
        %v613 = vadd.f32 0.0, %v612
        %614 = vmatmul.bf16.gmra.mxu0 %v314
        %v615 = vpop.f32.mrf.mxu0
        %v616 = vadd.f32 0.0, %v615
        %v617 = vpop.f32.mrf.mxu0
        %v618 = vadd.f32 0.0, %v617
        %619 = vmatmul.bf16.gmra.mxu0 %v317
        %v620 = vpop.f32.mrf.mxu0
        %v621 = vadd.f32 0.0, %v620
        %v622 = vpop.f32.mrf.mxu0
        %v623 = vadd.f32 0.0, %v622
        %624 = vmatmul.bf16.gmra.mxu0 %v320
        %v625 = vpop.f32.mrf.mxu0
        %v626 = vadd.f32 0.0, %v625
        %v627 = vpop.f32.mrf.mxu0
        %v628 = vadd.f32 0.0, %v627
        %629 = vmatmul.bf16.gmra.mxu0 %v323
        %v630 = vpop.f32.mrf.mxu0
        %v631 = vadd.f32 0.0, %v630
        %v632 = vpop.f32.mrf.mxu0
        %v633 = vadd.f32 0.0, %v632
        %634 = vmatmul.bf16.gmra.mxu0 %v326
        %v635 = vpop.f32.mrf.mxu0
        %v636 = vadd.f32 0.0, %v635
        %v637 = vpop.f32.mrf.mxu0
        %v638 = vadd.f32 0.0, %v637
        %639 = vmatmul.bf16.gmra.mxu0 %v329
        %v640 = vpop.f32.mrf.mxu0
        %v641 = vadd.f32 0.0, %v640
        %v642 = vpop.f32.mrf.mxu0
        %v643 = vadd.f32 0.0, %v642
        %644 = vdwg.mxu0
        %645 = vmatpush.bf16.msra.mxu0 %v530
        %646 = vmatpush.bf16.msra.mxu0 %v528
        %647 = vmatpush.bf16.msra.mxu0 %v526
        %648 = vmatpush.bf16.msra.mxu0 %v524
        %649 = vmatpush.bf16.msra.mxu0 %v522
        %650 = vmatpush.bf16.msra.mxu0 %v520
        %651 = vmatpush.bf16.msra.mxu0 %v518
        %652 = vmatpush.bf16.msra.mxu0 %v516
        %653 = vmatmul.bf16.gmra.mxu0 %v309
        %v654 = vpop.f32.mrf.mxu0
        %v655 = vadd.f32 %v606, %v654
        %v656 = vpop.f32.mrf.mxu0
        %v657 = vadd.f32 %v608, %v656
        %658 = vmatmul.bf16.gmra.mxu0 %v312
        %v659 = vpop.f32.mrf.mxu0
        %v660 = vadd.f32 %v611, %v659
        %v661 = vpop.f32.mrf.mxu0
        %v662 = vadd.f32 %v613, %v661
        %663 = vmatmul.bf16.gmra.mxu0 %v315
        %v664 = vpop.f32.mrf.mxu0
        %v665 = vadd.f32 %v616, %v664
        %v666 = vpop.f32.mrf.mxu0
        %v667 = vadd.f32 %v618, %v666
        %668 = vmatmul.bf16.gmra.mxu0 %v318
        %v669 = vpop.f32.mrf.mxu0
        %v670 = vadd.f32 %v621, %v669
        %v671 = vpop.f32.mrf.mxu0
        %v672 = vadd.f32 %v623, %v671
        %673 = vmatmul.bf16.gmra.mxu0 %v321
        %v674 = vpop.f32.mrf.mxu0
        %v675 = vadd.f32 %v626, %v674
        %v676 = vpop.f32.mrf.mxu0
        %v677 = vadd.f32 %v628, %v676
        %678 = vmatmul.bf16.gmra.mxu0 %v324
        %v679 = vpop.f32.mrf.mxu0
        %v680 = vadd.f32 %v631, %v679
        %v681 = vpop.f32.mrf.mxu0
        %v682 = vadd.f32 %v633, %v681
        %683 = vmatmul.bf16.gmra.mxu0 %v327
        %v684 = vpop.f32.mrf.mxu0
        %v685 = vadd.f32 %v636, %v684
        %v686 = vpop.f32.mrf.mxu0
        %v687 = vadd.f32 %v638, %v686
        %688 = vmatmul.bf16.gmra.mxu0 %v330
        %v689 = vpop.f32.mrf.mxu0
        %v690 = vadd.f32 %v641, %v689
        %v691 = vpop.f32.mrf.mxu0
        %v692 = vadd.f32 %v643, %v691
        %693 = vdwg.mxu0
        %694 = vmatpush.bf16.msra.mxu0 %v546
        %695 = vmatpush.bf16.msra.mxu0 %v544
        %696 = vmatpush.bf16.msra.mxu0 %v542
        %697 = vmatpush.bf16.msra.mxu0 %v540
        %698 = vmatpush.bf16.msra.mxu0 %v538
        %699 = vmatpush.bf16.msra.mxu0 %v536
        %700 = vmatpush.bf16.msra.mxu0 %v534
        %701 = vmatpush.bf16.msra.mxu0 %v532
        %702 = vmatmul.bf16.gmra.mxu0 %v310
        %v703 = vpop.f32.mrf.mxu0
        %v704 = vadd.f32 %v655, %v703
        %v705 = vpop.f32.mrf.mxu0
        %v706 = vadd.f32 %v657, %v705
        %707 = vmatmul.bf16.gmra.mxu0 %v313
        %v708 = vpop.f32.mrf.mxu0
        %v709 = vadd.f32 %v660, %v708
        %v710 = vpop.f32.mrf.mxu0
        %v711 = vadd.f32 %v662, %v710
        %712 = vmatmul.bf16.gmra.mxu0 %v316
        %v713 = vpop.f32.mrf.mxu0
        %v714 = vadd.f32 %v665, %v713
        %v715 = vpop.f32.mrf.mxu0
        %v716 = vadd.f32 %v667, %v715
        %717 = vmatmul.bf16.gmra.mxu0 %v319
        %v718 = vpop.f32.mrf.mxu0
        %v719 = vadd.f32 %v670, %v718
        %v720 = vpop.f32.mrf.mxu0
        %v721 = vadd.f32 %v672, %v720
        %722 = vmatmul.bf16.gmra.mxu0 %v322
        %v723 = vpop.f32.mrf.mxu0
        %v724 = vadd.f32 %v675, %v723
        %v725 = vpop.f32.mrf.mxu0
        %v726 = vadd.f32 %v677, %v725
        %727 = vmatmul.bf16.gmra.mxu0 %v325
        %v728 = vpop.f32.mrf.mxu0
        %v729 = vadd.f32 %v680, %v728
        %v730 = vpop.f32.mrf.mxu0
        %v731 = vadd.f32 %v682, %v730
        %732 = vmatmul.bf16.gmra.mxu0 %v328
        %v733 = vpop.f32.mrf.mxu0
        %v734 = vadd.f32 %v685, %v733
        %v735 = vpop.f32.mrf.mxu0
        %v736 = vadd.f32 %v687, %v735
        %737 = vmatmul.bf16.gmra.mxu0 %v331
        %v738 = vpop.f32.mrf.mxu0
        %v739 = vadd.f32 %v690, %v738
        %v740 = vpop.f32.mrf.mxu0
        %v741 = vadd.f32 %v692, %v740
        %742 = vdwg.mxu0
        %743 = vmatpush.bf16.msra.mxu0 %v515
        %744 = vmatpush.bf16.msra.mxu0 %v513
        %745 = vmatpush.bf16.msra.mxu0 %v511
        %746 = vmatpush.bf16.msra.mxu0 %v509
        %747 = vmatpush.bf16.msra.mxu0 %v507
        %748 = vmatpush.bf16.msra.mxu0 %v505
        %749 = vmatpush.bf16.msra.mxu0 %v503
        %750 = vmatpush.bf16.msra.mxu0 %v501
        %751 = vmatmul.bf16.gmra.mxu0 %v308
        %v752 = vpop.f32.mrf.mxu0
        %v753 = vadd.f32 0.0, %v752
        %v754 = vpop.f32.mrf.mxu0
        %v755 = vadd.f32 0.0, %v754
        %756 = vmatmul.bf16.gmra.mxu0 %v311
        %v757 = vpop.f32.mrf.mxu0
        %v758 = vadd.f32 0.0, %v757
        %v759 = vpop.f32.mrf.mxu0
        %v760 = vadd.f32 0.0, %v759
        %761 = vmatmul.bf16.gmra.mxu0 %v314
        %v762 = vpop.f32.mrf.mxu0
        %v763 = vadd.f32 0.0, %v762
        %v764 = vpop.f32.mrf.mxu0
        %v765 = vadd.f32 0.0, %v764
        %766 = vmatmul.bf16.gmra.mxu0 %v317
        %v767 = vpop.f32.mrf.mxu0
        %v768 = vadd.f32 0.0, %v767
        %v769 = vpop.f32.mrf.mxu0
        %v770 = vadd.f32 0.0, %v769
        %771 = vmatmul.bf16.gmra.mxu0 %v320
        %v772 = vpop.f32.mrf.mxu0
        %v773 = vadd.f32 0.0, %v772
        %v774 = vpop.f32.mrf.mxu0
        %v775 = vadd.f32 0.0, %v774
        %776 = vmatmul.bf16.gmra.mxu0 %v323
        %v777 = vpop.f32.mrf.mxu0
        %v778 = vadd.f32 0.0, %v777
        %v779 = vpop.f32.mrf.mxu0
        %v780 = vadd.f32 0.0, %v779
        %781 = vmatmul.bf16.gmra.mxu0 %v326
        %v782 = vpop.f32.mrf.mxu0
        %v783 = vadd.f32 0.0, %v782
        %v784 = vpop.f32.mrf.mxu0
        %v785 = vadd.f32 0.0, %v784
        %786 = vmatmul.bf16.gmra.mxu0 %v329
        %v787 = vpop.f32.mrf.mxu0
        %v788 = vadd.f32 0.0, %v787
        %v789 = vpop.f32.mrf.mxu0
        %v790 = vadd.f32 0.0, %v789
        %791 = vdwg.mxu0
        %792 = vmatpush.bf16.msra.mxu0 %v531
        %793 = vmatpush.bf16.msra.mxu0 %v529
        %794 = vmatpush.bf16.msra.mxu0 %v527
        %795 = vmatpush.bf16.msra.mxu0 %v525
        %796 = vmatpush.bf16.msra.mxu0 %v523
        %797 = vmatpush.bf16.msra.mxu0 %v521
        %798 = vmatpush.bf16.msra.mxu0 %v519
        %799 = vmatpush.bf16.msra.mxu0 %v517
        %800 = vmatmul.bf16.gmra.mxu0 %v309
        %v801 = vpop.f32.mrf.mxu0
        %v802 = vadd.f32 %v753, %v801
        %v803 = vpop.f32.mrf.mxu0
        %v804 = vadd.f32 %v755, %v803
        %805 = vmatmul.bf16.gmra.mxu0 %v312
        %v806 = vpop.f32.mrf.mxu0
        %v807 = vadd.f32 %v758, %v806
        %v808 = vpop.f32.mrf.mxu0
        %v809 = vadd.f32 %v760, %v808
        %810 = vmatmul.bf16.gmra.mxu0 %v315
        %v811 = vpop.f32.mrf.mxu0
        %v812 = vadd.f32 %v763, %v811
        %v813 = vpop.f32.mrf.mxu0
        %v814 = vadd.f32 %v765, %v813
        %815 = vmatmul.bf16.gmra.mxu0 %v318
        %v816 = vpop.f32.mrf.mxu0
        %v817 = vadd.f32 %v768, %v816
        %v818 = vpop.f32.mrf.mxu0
        %v819 = vadd.f32 %v770, %v818
        %820 = vmatmul.bf16.gmra.mxu0 %v321
        %v821 = vpop.f32.mrf.mxu0
        %v822 = vadd.f32 %v773, %v821
        %v823 = vpop.f32.mrf.mxu0
        %v824 = vadd.f32 %v775, %v823
        %825 = vmatmul.bf16.gmra.mxu0 %v324
        %v826 = vpop.f32.mrf.mxu0
        %v827 = vadd.f32 %v778, %v826
        %v828 = vpop.f32.mrf.mxu0
        %v829 = vadd.f32 %v780, %v828
        %830 = vmatmul.bf16.gmra.mxu0 %v327
        %v831 = vpop.f32.mrf.mxu0
        %v832 = vadd.f32 %v783, %v831
        %v833 = vpop.f32.mrf.mxu0
        %v834 = vadd.f32 %v785, %v833
        %835 = vmatmul.bf16.gmra.mxu0 %v330
        %v836 = vpop.f32.mrf.mxu0
        %v837 = vadd.f32 %v788, %v836
        %v838 = vpop.f32.mrf.mxu0
        %v839 = vadd.f32 %v790, %v838
        %840 = vdwg.mxu0
        %841 = vmatpush.bf16.msra.mxu0 %v547
        %842 = vmatpush.bf16.msra.mxu0 %v545
        %843 = vmatpush.bf16.msra.mxu0 %v543
        %844 = vmatpush.bf16.msra.mxu0 %v541
        %845 = vmatpush.bf16.msra.mxu0 %v539
        %846 = vmatpush.bf16.msra.mxu0 %v537
        %847 = vmatpush.bf16.msra.mxu0 %v535
        %848 = vmatpush.bf16.msra.mxu0 %v533
        %849 = vmatmul.bf16.gmra.mxu0 %v310
        %v850 = vpop.f32.mrf.mxu0
        %v851 = vadd.f32 %v802, %v850
        %v852 = vpop.f32.mrf.mxu0
        %v853 = vadd.f32 %v804, %v852
        %854 = vmatmul.bf16.gmra.mxu0 %v313
        %v855 = vpop.f32.mrf.mxu0
        %v856 = vadd.f32 %v807, %v855
        %v857 = vpop.f32.mrf.mxu0
        %v858 = vadd.f32 %v809, %v857
        %859 = vmatmul.bf16.gmra.mxu0 %v316
        %v860 = vpop.f32.mrf.mxu0
        %v861 = vadd.f32 %v812, %v860
        %v862 = vpop.f32.mrf.mxu0
        %v863 = vadd.f32 %v814, %v862
        %864 = vmatmul.bf16.gmra.mxu0 %v319
        %v865 = vpop.f32.mrf.mxu0
        %v866 = vadd.f32 %v817, %v865
        %v867 = vpop.f32.mrf.mxu0
        %v868 = vadd.f32 %v819, %v867
        %869 = vmatmul.bf16.gmra.mxu0 %v322
        %v870 = vpop.f32.mrf.mxu0
        %v871 = vadd.f32 %v822, %v870
        %v872 = vpop.f32.mrf.mxu0
        %v873 = vadd.f32 %v824, %v872
        %874 = vmatmul.bf16.gmra.mxu0 %v325
        %v875 = vpop.f32.mrf.mxu0
        %v876 = vadd.f32 %v827, %v875
        %v877 = vpop.f32.mrf.mxu0
        %v878 = vadd.f32 %v829, %v877
        %879 = vmatmul.bf16.gmra.mxu0 %v328
        %v880 = vpop.f32.mrf.mxu0
        %v881 = vadd.f32 %v832, %v880
        %v882 = vpop.f32.mrf.mxu0
        %v883 = vadd.f32 %v834, %v882
        %884 = vmatmul.bf16.gmra.mxu0 %v331
        %v885 = vpop.f32.mrf.mxu0
        %v886 = vadd.f32 %v837, %v885
        %v887 = vpop.f32.mrf.mxu0
        %v888 = vadd.f32 %v839, %v887
        %889 = vdwg.mxu0
        %891 = vrot.lane.b32.xlu0 %v704, 64
        %v892 = vpop.permute.xlu0 %891
        %vm893 = vcmask 523264
        %v894 = vsel %vm893, %v704, 0
        %v896 = vsel %vm893, %v892, 0
        %898 = vmatpush.xpose.msra.mxu0 0.0
        %899 = vmatpush.xpose.msra.mxu0 0.0
        %900 = vmatpush.xpose.msra.mxu0 0.0
        %901 = vmatpush.xpose.msra.mxu0 0.0
        %902 = vmatpush.xpose.msra.mxu0 0.0
        %903 = vmatpush.xpose.msra.mxu0 0.0
        %904 = vmatpush.xpose.msra.mxu0 0.0
        %905 = vmatpush.xpose.msra.mxu0 0.0
        %906 = vmatpush.xpose.msra.mxu0 0.0
        %907 = vmatpush.xpose.msra.mxu0 0.0
        %908 = vmatpush.xpose.msra.mxu0 0.0
        %909 = vmatpush.xpose.msra.mxu0 0.0
        %910 = vmatpush.xpose.msra.mxu0 0.0
        %911 = vmatpush.xpose.msra.mxu0 0.0
        %912 = vmatpush.xpose.msra.mxu0 0.0
        %913 = vmatpush.xpose.msra.mxu0 %v896
        %914 = vmatmul.f32.gmra.mxu0 %v894
        %v915 = vpop.f32.mrf.mxu0
        %v916 = vadd.f32 0.0, %v915
        %917 = vdwg.mxu0
        %919 = vrot.lane.b32.xlu0 %v706, 64
        %v920 = vpop.permute.xlu0 %919
        %v921 = vsel %vm893, %v706, 0
        %v923 = vsel %vm893, %v920, 0
        %925 = vmatpush.xpose.msra.mxu0 0.0
        %926 = vmatpush.xpose.msra.mxu0 0.0
        %927 = vmatpush.xpose.msra.mxu0 0.0
        %928 = vmatpush.xpose.msra.mxu0 0.0
        %929 = vmatpush.xpose.msra.mxu0 0.0
        %930 = vmatpush.xpose.msra.mxu0 0.0
        %931 = vmatpush.xpose.msra.mxu0 0.0
        %932 = vmatpush.xpose.msra.mxu0 0.0
        %933 = vmatpush.xpose.msra.mxu0 0.0
        %934 = vmatpush.xpose.msra.mxu0 0.0
        %935 = vmatpush.xpose.msra.mxu0 0.0
        %936 = vmatpush.xpose.msra.mxu0 0.0
        %937 = vmatpush.xpose.msra.mxu0 0.0
        %938 = vmatpush.xpose.msra.mxu0 0.0
        %939 = vmatpush.xpose.msra.mxu0 0.0
        %940 = vmatpush.xpose.msra.mxu0 %v923
        %941 = vmatmul.f32.gmra.mxu0 %v921
        %v942 = vpop.f32.mrf.mxu0
        %v943 = vadd.f32 0.0, %v942
        %944 = vdwg.mxu0
        %946 = vrot.lane.b32.xlu0 %v709, 64
        %v947 = vpop.permute.xlu0 %946
        %v948 = vsel %vm893, %v709, 0
        %v950 = vsel %vm893, %v947, 0
        %952 = vmatpush.xpose.msra.mxu0 0.0
        %953 = vmatpush.xpose.msra.mxu0 0.0
        %954 = vmatpush.xpose.msra.mxu0 0.0
        %955 = vmatpush.xpose.msra.mxu0 0.0
        %956 = vmatpush.xpose.msra.mxu0 0.0
        %957 = vmatpush.xpose.msra.mxu0 0.0
        %958 = vmatpush.xpose.msra.mxu0 0.0
        %959 = vmatpush.xpose.msra.mxu0 0.0
        %960 = vmatpush.xpose.msra.mxu0 0.0
        %961 = vmatpush.xpose.msra.mxu0 0.0
        %962 = vmatpush.xpose.msra.mxu0 0.0
        %963 = vmatpush.xpose.msra.mxu0 0.0
        %964 = vmatpush.xpose.msra.mxu0 0.0
        %965 = vmatpush.xpose.msra.mxu0 0.0
        %966 = vmatpush.xpose.msra.mxu0 0.0
        %967 = vmatpush.xpose.msra.mxu0 %v950
        %968 = vmatmul.f32.gmra.mxu0 %v948
        %v969 = vpop.f32.mrf.mxu0
        %v970 = vadd.f32 0.0, %v969
        %971 = vdwg.mxu0
        %973 = vrot.lane.b32.xlu0 %v711, 64
        %v974 = vpop.permute.xlu0 %973
        %v975 = vsel %vm893, %v711, 0
        %v977 = vsel %vm893, %v974, 0
        %979 = vmatpush.xpose.msra.mxu0 0.0
        %980 = vmatpush.xpose.msra.mxu0 0.0
        %981 = vmatpush.xpose.msra.mxu0 0.0
        %982 = vmatpush.xpose.msra.mxu0 0.0
        %983 = vmatpush.xpose.msra.mxu0 0.0
        %984 = vmatpush.xpose.msra.mxu0 0.0
        %985 = vmatpush.xpose.msra.mxu0 0.0
        %986 = vmatpush.xpose.msra.mxu0 0.0
        %987 = vmatpush.xpose.msra.mxu0 0.0
        %988 = vmatpush.xpose.msra.mxu0 0.0
        %989 = vmatpush.xpose.msra.mxu0 0.0
        %990 = vmatpush.xpose.msra.mxu0 0.0
        %991 = vmatpush.xpose.msra.mxu0 0.0
        %992 = vmatpush.xpose.msra.mxu0 0.0
        %993 = vmatpush.xpose.msra.mxu0 0.0
        %994 = vmatpush.xpose.msra.mxu0 %v977
        %995 = vmatmul.f32.gmra.mxu0 %v975
        %v996 = vpop.f32.mrf.mxu0
        %v997 = vadd.f32 0.0, %v996
        %998 = vdwg.mxu0
        %1000 = vrot.lane.b32.xlu0 %v714, 64
        %v1001 = vpop.permute.xlu0 %1000
        %v1002 = vsel %vm893, %v714, 0
        %v1004 = vsel %vm893, %v1001, 0
        %1006 = vmatpush.xpose.msra.mxu0 0.0
        %1007 = vmatpush.xpose.msra.mxu0 0.0
        %1008 = vmatpush.xpose.msra.mxu0 0.0
        %1009 = vmatpush.xpose.msra.mxu0 0.0
        %1010 = vmatpush.xpose.msra.mxu0 0.0
        %1011 = vmatpush.xpose.msra.mxu0 0.0
        %1012 = vmatpush.xpose.msra.mxu0 0.0
        %1013 = vmatpush.xpose.msra.mxu0 0.0
        %1014 = vmatpush.xpose.msra.mxu0 0.0
        %1015 = vmatpush.xpose.msra.mxu0 0.0
        %1016 = vmatpush.xpose.msra.mxu0 0.0
        %1017 = vmatpush.xpose.msra.mxu0 0.0
        %1018 = vmatpush.xpose.msra.mxu0 0.0
        %1019 = vmatpush.xpose.msra.mxu0 0.0
        %1020 = vmatpush.xpose.msra.mxu0 0.0
        %1021 = vmatpush.xpose.msra.mxu0 %v1004
        %1022 = vmatmul.f32.gmra.mxu0 %v1002
        %v1023 = vpop.f32.mrf.mxu0
        %v1024 = vadd.f32 0.0, %v1023
        %1025 = vdwg.mxu0
        %1027 = vrot.lane.b32.xlu0 %v716, 64
        %v1028 = vpop.permute.xlu0 %1027
        %v1029 = vsel %vm893, %v716, 0
        %v1031 = vsel %vm893, %v1028, 0
        %1033 = vmatpush.xpose.msra.mxu0 0.0
        %1034 = vmatpush.xpose.msra.mxu0 0.0
        %1035 = vmatpush.xpose.msra.mxu0 0.0
        %1036 = vmatpush.xpose.msra.mxu0 0.0
        %1037 = vmatpush.xpose.msra.mxu0 0.0
        %1038 = vmatpush.xpose.msra.mxu0 0.0
        %1039 = vmatpush.xpose.msra.mxu0 0.0
        %1040 = vmatpush.xpose.msra.mxu0 0.0
        %1041 = vmatpush.xpose.msra.mxu0 0.0
        %1042 = vmatpush.xpose.msra.mxu0 0.0
        %1043 = vmatpush.xpose.msra.mxu0 0.0
        %1044 = vmatpush.xpose.msra.mxu0 0.0
        %1045 = vmatpush.xpose.msra.mxu0 0.0
        %1046 = vmatpush.xpose.msra.mxu0 0.0
        %1047 = vmatpush.xpose.msra.mxu0 0.0
        %1048 = vmatpush.xpose.msra.mxu0 %v1031
        %1049 = vmatmul.f32.gmra.mxu0 %v1029
        %v1050 = vpop.f32.mrf.mxu0
        %v1051 = vadd.f32 0.0, %v1050
        %1052 = vdwg.mxu0
        %1054 = vrot.lane.b32.xlu0 %v719, 64
        %v1055 = vpop.permute.xlu0 %1054
        %v1056 = vsel %vm893, %v719, 0
        %v1058 = vsel %vm893, %v1055, 0
        %1060 = vmatpush.xpose.msra.mxu0 0.0
        %1061 = vmatpush.xpose.msra.mxu0 0.0
        %1062 = vmatpush.xpose.msra.mxu0 0.0
        %1063 = vmatpush.xpose.msra.mxu0 0.0
        %1064 = vmatpush.xpose.msra.mxu0 0.0
        %1065 = vmatpush.xpose.msra.mxu0 0.0
        %1066 = vmatpush.xpose.msra.mxu0 0.0
        %1067 = vmatpush.xpose.msra.mxu0 0.0
        %1068 = vmatpush.xpose.msra.mxu0 0.0
        %1069 = vmatpush.xpose.msra.mxu0 0.0
        %1070 = vmatpush.xpose.msra.mxu0 0.0
        %1071 = vmatpush.xpose.msra.mxu0 0.0
        %1072 = vmatpush.xpose.msra.mxu0 0.0
        %1073 = vmatpush.xpose.msra.mxu0 0.0
        %1074 = vmatpush.xpose.msra.mxu0 0.0
        %1075 = vmatpush.xpose.msra.mxu0 %v1058
        %1076 = vmatmul.f32.gmra.mxu0 %v1056
        %v1077 = vpop.f32.mrf.mxu0
        %v1078 = vadd.f32 0.0, %v1077
        %1079 = vdwg.mxu0
        %1081 = vrot.lane.b32.xlu0 %v721, 64
        %v1082 = vpop.permute.xlu0 %1081
        %v1083 = vsel %vm893, %v721, 0
        %v1085 = vsel %vm893, %v1082, 0
        %1087 = vmatpush.xpose.msra.mxu0 0.0
        %1088 = vmatpush.xpose.msra.mxu0 0.0
        %1089 = vmatpush.xpose.msra.mxu0 0.0
        %1090 = vmatpush.xpose.msra.mxu0 0.0
        %1091 = vmatpush.xpose.msra.mxu0 0.0
        %1092 = vmatpush.xpose.msra.mxu0 0.0
        %1093 = vmatpush.xpose.msra.mxu0 0.0
        %1094 = vmatpush.xpose.msra.mxu0 0.0
        %1095 = vmatpush.xpose.msra.mxu0 0.0
        %1096 = vmatpush.xpose.msra.mxu0 0.0
        %1097 = vmatpush.xpose.msra.mxu0 0.0
        %1098 = vmatpush.xpose.msra.mxu0 0.0
        %1099 = vmatpush.xpose.msra.mxu0 0.0
        %1100 = vmatpush.xpose.msra.mxu0 0.0
        %1101 = vmatpush.xpose.msra.mxu0 0.0
        %1102 = vmatpush.xpose.msra.mxu0 %v1085
        %1103 = vmatmul.f32.gmra.mxu0 %v1083
        %v1104 = vpop.f32.mrf.mxu0
        %v1105 = vadd.f32 0.0, %v1104
        %1106 = vdwg.mxu0
        %1108 = vrot.lane.b32.xlu0 %v724, 64
        %v1109 = vpop.permute.xlu0 %1108
        %v1110 = vsel %vm893, %v724, 0
        %v1112 = vsel %vm893, %v1109, 0
        %1114 = vmatpush.xpose.msra.mxu0 0.0
        %1115 = vmatpush.xpose.msra.mxu0 0.0
        %1116 = vmatpush.xpose.msra.mxu0 0.0
        %1117 = vmatpush.xpose.msra.mxu0 0.0
        %1118 = vmatpush.xpose.msra.mxu0 0.0
        %1119 = vmatpush.xpose.msra.mxu0 0.0
        %1120 = vmatpush.xpose.msra.mxu0 0.0
        %1121 = vmatpush.xpose.msra.mxu0 0.0
        %1122 = vmatpush.xpose.msra.mxu0 0.0
        %1123 = vmatpush.xpose.msra.mxu0 0.0
        %1124 = vmatpush.xpose.msra.mxu0 0.0
        %1125 = vmatpush.xpose.msra.mxu0 0.0
        %1126 = vmatpush.xpose.msra.mxu0 0.0
        %1127 = vmatpush.xpose.msra.mxu0 0.0
        %1128 = vmatpush.xpose.msra.mxu0 0.0
        %1129 = vmatpush.xpose.msra.mxu0 %v1112
        %1130 = vmatmul.f32.gmra.mxu0 %v1110
        %v1131 = vpop.f32.mrf.mxu0
        %v1132 = vadd.f32 0.0, %v1131
        %1133 = vdwg.mxu0
        %1135 = vrot.lane.b32.xlu0 %v726, 64
        %v1136 = vpop.permute.xlu0 %1135
        %v1137 = vsel %vm893, %v726, 0
        %v1139 = vsel %vm893, %v1136, 0
        %1141 = vmatpush.xpose.msra.mxu0 0.0
        %1142 = vmatpush.xpose.msra.mxu0 0.0
        %1143 = vmatpush.xpose.msra.mxu0 0.0
        %1144 = vmatpush.xpose.msra.mxu0 0.0
        %1145 = vmatpush.xpose.msra.mxu0 0.0
        %1146 = vmatpush.xpose.msra.mxu0 0.0
        %1147 = vmatpush.xpose.msra.mxu0 0.0
        %1148 = vmatpush.xpose.msra.mxu0 0.0
        %1149 = vmatpush.xpose.msra.mxu0 0.0
        %1150 = vmatpush.xpose.msra.mxu0 0.0
        %1151 = vmatpush.xpose.msra.mxu0 0.0
        %1152 = vmatpush.xpose.msra.mxu0 0.0
        %1153 = vmatpush.xpose.msra.mxu0 0.0
        %1154 = vmatpush.xpose.msra.mxu0 0.0
        %1155 = vmatpush.xpose.msra.mxu0 0.0
        %1156 = vmatpush.xpose.msra.mxu0 %v1139
        %1157 = vmatmul.f32.gmra.mxu0 %v1137
        %v1158 = vpop.f32.mrf.mxu0
        %v1159 = vadd.f32 0.0, %v1158
        %1160 = vdwg.mxu0
        %1162 = vrot.lane.b32.xlu0 %v729, 64
        %v1163 = vpop.permute.xlu0 %1162
        %v1164 = vsel %vm893, %v729, 0
        %v1166 = vsel %vm893, %v1163, 0
        %1168 = vmatpush.xpose.msra.mxu0 0.0
        %1169 = vmatpush.xpose.msra.mxu0 0.0
        %1170 = vmatpush.xpose.msra.mxu0 0.0
        %1171 = vmatpush.xpose.msra.mxu0 0.0
        %1172 = vmatpush.xpose.msra.mxu0 0.0
        %1173 = vmatpush.xpose.msra.mxu0 0.0
        %1174 = vmatpush.xpose.msra.mxu0 0.0
        %1175 = vmatpush.xpose.msra.mxu0 0.0
        %1176 = vmatpush.xpose.msra.mxu0 0.0
        %1177 = vmatpush.xpose.msra.mxu0 0.0
        %1178 = vmatpush.xpose.msra.mxu0 0.0
        %1179 = vmatpush.xpose.msra.mxu0 0.0
        %1180 = vmatpush.xpose.msra.mxu0 0.0
        %1181 = vmatpush.xpose.msra.mxu0 0.0
        %1182 = vmatpush.xpose.msra.mxu0 0.0
        %1183 = vmatpush.xpose.msra.mxu0 %v1166
        %1184 = vmatmul.f32.gmra.mxu0 %v1164
        %v1185 = vpop.f32.mrf.mxu0
        %v1186 = vadd.f32 0.0, %v1185
        %1187 = vdwg.mxu0
        %1189 = vrot.lane.b32.xlu0 %v731, 64
        %v1190 = vpop.permute.xlu0 %1189
        %v1191 = vsel %vm893, %v731, 0
        %v1193 = vsel %vm893, %v1190, 0
        %1195 = vmatpush.xpose.msra.mxu0 0.0
        %1196 = vmatpush.xpose.msra.mxu0 0.0
        %1197 = vmatpush.xpose.msra.mxu0 0.0
        %1198 = vmatpush.xpose.msra.mxu0 0.0
        %1199 = vmatpush.xpose.msra.mxu0 0.0
        %1200 = vmatpush.xpose.msra.mxu0 0.0
        %1201 = vmatpush.xpose.msra.mxu0 0.0
        %1202 = vmatpush.xpose.msra.mxu0 0.0
        %1203 = vmatpush.xpose.msra.mxu0 0.0
        %1204 = vmatpush.xpose.msra.mxu0 0.0
        %1205 = vmatpush.xpose.msra.mxu0 0.0
        %1206 = vmatpush.xpose.msra.mxu0 0.0
        %1207 = vmatpush.xpose.msra.mxu0 0.0
        %1208 = vmatpush.xpose.msra.mxu0 0.0
        %1209 = vmatpush.xpose.msra.mxu0 0.0
        %1210 = vmatpush.xpose.msra.mxu0 %v1193
        %1211 = vmatmul.f32.gmra.mxu0 %v1191
        %v1212 = vpop.f32.mrf.mxu0
        %v1213 = vadd.f32 0.0, %v1212
        %1214 = vdwg.mxu0
        %1216 = vrot.lane.b32.xlu0 %v734, 64
        %v1217 = vpop.permute.xlu0 %1216
        %v1218 = vsel %vm893, %v734, 0
        %v1220 = vsel %vm893, %v1217, 0
        %1222 = vmatpush.xpose.msra.mxu0 0.0
        %1223 = vmatpush.xpose.msra.mxu0 0.0
        %1224 = vmatpush.xpose.msra.mxu0 0.0
        %1225 = vmatpush.xpose.msra.mxu0 0.0
        %1226 = vmatpush.xpose.msra.mxu0 0.0
        %1227 = vmatpush.xpose.msra.mxu0 0.0
        %1228 = vmatpush.xpose.msra.mxu0 0.0
        %1229 = vmatpush.xpose.msra.mxu0 0.0
        %1230 = vmatpush.xpose.msra.mxu0 0.0
        %1231 = vmatpush.xpose.msra.mxu0 0.0
        %1232 = vmatpush.xpose.msra.mxu0 0.0
        %1233 = vmatpush.xpose.msra.mxu0 0.0
        %1234 = vmatpush.xpose.msra.mxu0 0.0
        %1235 = vmatpush.xpose.msra.mxu0 0.0
        %1236 = vmatpush.xpose.msra.mxu0 0.0
        %1237 = vmatpush.xpose.msra.mxu0 %v1220
        %1238 = vmatmul.f32.gmra.mxu0 %v1218
        %v1239 = vpop.f32.mrf.mxu0
        %v1240 = vadd.f32 0.0, %v1239
        %1241 = vdwg.mxu0
        %1243 = vrot.lane.b32.xlu0 %v736, 64
        %v1244 = vpop.permute.xlu0 %1243
        %v1245 = vsel %vm893, %v736, 0
        %v1247 = vsel %vm893, %v1244, 0
        %1249 = vmatpush.xpose.msra.mxu0 0.0
        %1250 = vmatpush.xpose.msra.mxu0 0.0
        %1251 = vmatpush.xpose.msra.mxu0 0.0
        %1252 = vmatpush.xpose.msra.mxu0 0.0
        %1253 = vmatpush.xpose.msra.mxu0 0.0
        %1254 = vmatpush.xpose.msra.mxu0 0.0
        %1255 = vmatpush.xpose.msra.mxu0 0.0
        %1256 = vmatpush.xpose.msra.mxu0 0.0
        %1257 = vmatpush.xpose.msra.mxu0 0.0
        %1258 = vmatpush.xpose.msra.mxu0 0.0
        %1259 = vmatpush.xpose.msra.mxu0 0.0
        %1260 = vmatpush.xpose.msra.mxu0 0.0
        %1261 = vmatpush.xpose.msra.mxu0 0.0
        %1262 = vmatpush.xpose.msra.mxu0 0.0
        %1263 = vmatpush.xpose.msra.mxu0 0.0
        %1264 = vmatpush.xpose.msra.mxu0 %v1247
        %1265 = vmatmul.f32.gmra.mxu0 %v1245
        %v1266 = vpop.f32.mrf.mxu0
        %v1267 = vadd.f32 0.0, %v1266
        %1268 = vdwg.mxu0
        %1270 = vrot.lane.b32.xlu0 %v739, 64
        %v1271 = vpop.permute.xlu0 %1270
        %v1272 = vsel %vm893, %v739, 0
        %v1274 = vsel %vm893, %v1271, 0
        %1276 = vmatpush.xpose.msra.mxu0 0.0
        %1277 = vmatpush.xpose.msra.mxu0 0.0
        %1278 = vmatpush.xpose.msra.mxu0 0.0
        %1279 = vmatpush.xpose.msra.mxu0 0.0
        %1280 = vmatpush.xpose.msra.mxu0 0.0
        %1281 = vmatpush.xpose.msra.mxu0 0.0
        %1282 = vmatpush.xpose.msra.mxu0 0.0
        %1283 = vmatpush.xpose.msra.mxu0 0.0
        %1284 = vmatpush.xpose.msra.mxu0 0.0
        %1285 = vmatpush.xpose.msra.mxu0 0.0
        %1286 = vmatpush.xpose.msra.mxu0 0.0
        %1287 = vmatpush.xpose.msra.mxu0 0.0
        %1288 = vmatpush.xpose.msra.mxu0 0.0
        %1289 = vmatpush.xpose.msra.mxu0 0.0
        %1290 = vmatpush.xpose.msra.mxu0 0.0
        %1291 = vmatpush.xpose.msra.mxu0 %v1274
        %1292 = vmatmul.f32.gmra.mxu0 %v1272
        %v1293 = vpop.f32.mrf.mxu0
        %v1294 = vadd.f32 0.0, %v1293
        %1295 = vdwg.mxu0
        %1297 = vrot.lane.b32.xlu0 %v741, 64
        %v1298 = vpop.permute.xlu0 %1297
        %v1299 = vsel %vm893, %v741, 0
        %v1301 = vsel %vm893, %v1298, 0
        %1303 = vmatpush.xpose.msra.mxu0 0.0
        %1304 = vmatpush.xpose.msra.mxu0 0.0
        %1305 = vmatpush.xpose.msra.mxu0 0.0
        %1306 = vmatpush.xpose.msra.mxu0 0.0
        %1307 = vmatpush.xpose.msra.mxu0 0.0
        %1308 = vmatpush.xpose.msra.mxu0 0.0
        %1309 = vmatpush.xpose.msra.mxu0 0.0
        %1310 = vmatpush.xpose.msra.mxu0 0.0
        %1311 = vmatpush.xpose.msra.mxu0 0.0
        %1312 = vmatpush.xpose.msra.mxu0 0.0
        %1313 = vmatpush.xpose.msra.mxu0 0.0
        %1314 = vmatpush.xpose.msra.mxu0 0.0
        %1315 = vmatpush.xpose.msra.mxu0 0.0
        %1316 = vmatpush.xpose.msra.mxu0 0.0
        %1317 = vmatpush.xpose.msra.mxu0 0.0
        %1318 = vmatpush.xpose.msra.mxu0 %v1301
        %1319 = vmatmul.f32.gmra.mxu0 %v1299
        %v1320 = vpop.f32.mrf.mxu0
        %v1321 = vadd.f32 0.0, %v1320
        %1322 = vdwg.mxu0
        %v1323 = vlaneseq
        %v1324 = vshrl.u32 %v1323, 7
        %v1325 = vlaneseq
        %v1326 = vand.u32 %v1325, 127
        %vm1327 = vcmp.le.s32.totalorder %v1326, %v1324
        %v1328 = vsel %vm1327, 1, 0
        %vm1329 = vcmp.eq.s32.totalorder %v1328, 1
        %v1330 = vsel %vm1329, %v916, -inf
        %v1331 = vsel %vm1329, %v943, -inf
        %v1332 = vsel %vm1329, %v970, -inf
        %v1333 = vsel %vm1329, %v997, -inf
        %v1334 = vsel %vm1329, %v1024, -inf
        %v1335 = vsel %vm1329, %v1051, -inf
        %v1336 = vsel %vm1329, %v1078, -inf
        %v1337 = vsel %vm1329, %v1105, -inf
        %v1338 = vsel %vm1329, %v1132, -inf
        %v1339 = vsel %vm1329, %v1159, -inf
        %v1340 = vsel %vm1329, %v1186, -inf
        %v1341 = vsel %vm1329, %v1213, -inf
        %v1342 = vsel %vm1329, %v1240, -inf
        %v1343 = vsel %vm1329, %v1267, -inf
        %v1344 = vsel %vm1329, %v1294, -inf
        %v1345 = vsel %vm1329, %v1321, -inf
        %vm1346 = vcmask 64512
        %v1347 = vsel %vm1346, %v1330, -inf
        %1348 = vmax.xlane.f32.xlu0 %v1347
        %v1349 = vpop.xlane.xlu0 %1348
        %v1350 = vsel %vm1346, %v1331, -inf
        %1351 = vmax.xlane.f32.xlu0 %v1350
        %v1352 = vpop.xlane.xlu0 %1351
        %v1353 = vsel %vm1346, %v1332, -inf
        %1354 = vmax.xlane.f32.xlu0 %v1353
        %v1355 = vpop.xlane.xlu0 %1354
        %v1356 = vsel %vm1346, %v1333, -inf
        %1357 = vmax.xlane.f32.xlu0 %v1356
        %v1358 = vpop.xlane.xlu0 %1357
        %v1359 = vsel %vm1346, %v1334, -inf
        %1360 = vmax.xlane.f32.xlu0 %v1359
        %v1361 = vpop.xlane.xlu0 %1360
        %v1362 = vsel %vm1346, %v1335, -inf
        %1363 = vmax.xlane.f32.xlu0 %v1362
        %v1364 = vpop.xlane.xlu0 %1363
        %v1365 = vsel %vm1346, %v1336, -inf
        %1366 = vmax.xlane.f32.xlu0 %v1365
        %v1367 = vpop.xlane.xlu0 %1366
        %v1368 = vsel %vm1346, %v1337, -inf
        %1369 = vmax.xlane.f32.xlu0 %v1368
        %v1370 = vpop.xlane.xlu0 %1369
        %v1371 = vsel %vm1346, %v1338, -inf
        %1372 = vmax.xlane.f32.xlu0 %v1371
        %v1373 = vpop.xlane.xlu0 %1372
        %v1374 = vsel %vm1346, %v1339, -inf
        %1375 = vmax.xlane.f32.xlu0 %v1374
        %v1376 = vpop.xlane.xlu0 %1375
        %v1377 = vsel %vm1346, %v1340, -inf
        %1378 = vmax.xlane.f32.xlu0 %v1377
        %v1379 = vpop.xlane.xlu0 %1378
        %v1380 = vsel %vm1346, %v1341, -inf
        %1381 = vmax.xlane.f32.xlu0 %v1380
        %v1382 = vpop.xlane.xlu0 %1381
        %v1383 = vsel %vm1346, %v1342, -inf
        %1384 = vmax.xlane.f32.xlu0 %v1383
        %v1385 = vpop.xlane.xlu0 %1384
        %v1386 = vsel %vm1346, %v1343, -inf
        %1387 = vmax.xlane.f32.xlu0 %v1386
        %v1388 = vpop.xlane.xlu0 %1387
        %v1389 = vsel %vm1346, %v1344, -inf
        %1390 = vmax.xlane.f32.xlu0 %v1389
        %v1391 = vpop.xlane.xlu0 %1390
        %v1392 = vsel %vm1346, %v1345, -inf
        %1393 = vmax.xlane.f32.xlu0 %v1392
        %v1394 = vpop.xlane.xlu0 %1393
        %v1395 = vsub.f32 %v1330, %v1349
        %v1396 = vsub.f32 %v1331, %v1352
        %v1397 = vsub.f32 %v1332, %v1355
        %v1398 = vsub.f32 %v1333, %v1358
        %v1399 = vsub.f32 %v1334, %v1361
        %v1400 = vsub.f32 %v1335, %v1364
        %v1401 = vsub.f32 %v1336, %v1367
        %v1402 = vsub.f32 %v1337, %v1370
        %v1403 = vsub.f32 %v1338, %v1373
        %v1404 = vsub.f32 %v1339, %v1376
        %v1405 = vsub.f32 %v1340, %v1379
        %v1406 = vsub.f32 %v1341, %v1382
        %v1407 = vsub.f32 %v1342, %v1385
        %v1408 = vsub.f32 %v1343, %v1388
        %v1409 = vsub.f32 %v1344, %v1391
        %v1410 = vsub.f32 %v1345, %v1394
        %v1411 = vmul.f32 %v1395, 1.442695
        %v1412 = vpow.pop %v1411
        %v1413 = vmul.f32 %v1396, 1.442695
        %v1414 = vpow.pop %v1413
        %v1415 = vmul.f32 %v1397, 1.442695
        %v1416 = vpow.pop %v1415
        %v1417 = vmul.f32 %v1398, 1.442695
        %v1418 = vpow.pop %v1417
        %v1419 = vmul.f32 %v1399, 1.442695
        %v1420 = vpow.pop %v1419
        %v1421 = vmul.f32 %v1400, 1.442695
        %v1422 = vpow.pop %v1421
        %v1423 = vmul.f32 %v1401, 1.442695
        %v1424 = vpow.pop %v1423
        %v1425 = vmul.f32 %v1402, 1.442695
        %v1426 = vpow.pop %v1425
        %v1427 = vmul.f32 %v1403, 1.442695
        %v1428 = vpow.pop %v1427
        %v1429 = vmul.f32 %v1404, 1.442695
        %v1430 = vpow.pop %v1429
        %v1431 = vmul.f32 %v1405, 1.442695
        %v1432 = vpow.pop %v1431
        %v1433 = vmul.f32 %v1406, 1.442695
        %v1434 = vpow.pop %v1433
        %v1435 = vmul.f32 %v1407, 1.442695
        %v1436 = vpow.pop %v1435
        %v1437 = vmul.f32 %v1408, 1.442695
        %v1438 = vpow.pop %v1437
        %v1439 = vmul.f32 %v1409, 1.442695
        %v1440 = vpow.pop %v1439
        %v1441 = vmul.f32 %v1410, 1.442695
        %v1442 = vpow.pop %v1441
        %v1443 = vsel %vm1346, %v1412, 0.0
        %1444 = vadd.xlane.f32.xlu0 %v1443
        %v1445 = vpop.xlane.xlu0 %1444
        %v1446 = vsel %vm1346, %v1414, 0.0
        %1447 = vadd.xlane.f32.xlu0 %v1446
        %v1448 = vpop.xlane.xlu0 %1447
        %v1449 = vsel %vm1346, %v1416, 0.0
        %1450 = vadd.xlane.f32.xlu0 %v1449
        %v1451 = vpop.xlane.xlu0 %1450
        %v1452 = vsel %vm1346, %v1418, 0.0
        %1453 = vadd.xlane.f32.xlu0 %v1452
        %v1454 = vpop.xlane.xlu0 %1453
        %v1455 = vsel %vm1346, %v1420, 0.0
        %1456 = vadd.xlane.f32.xlu0 %v1455
        %v1457 = vpop.xlane.xlu0 %1456
        %v1458 = vsel %vm1346, %v1422, 0.0
        %1459 = vadd.xlane.f32.xlu0 %v1458
        %v1460 = vpop.xlane.xlu0 %1459
        %v1461 = vsel %vm1346, %v1424, 0.0
        %1462 = vadd.xlane.f32.xlu0 %v1461
        %v1463 = vpop.xlane.xlu0 %1462
        %v1464 = vsel %vm1346, %v1426, 0.0
        %1465 = vadd.xlane.f32.xlu0 %v1464
        %v1466 = vpop.xlane.xlu0 %1465
        %v1467 = vsel %vm1346, %v1428, 0.0
        %1468 = vadd.xlane.f32.xlu0 %v1467
        %v1469 = vpop.xlane.xlu0 %1468
        %v1470 = vsel %vm1346, %v1430, 0.0
        %1471 = vadd.xlane.f32.xlu0 %v1470
        %v1472 = vpop.xlane.xlu0 %1471
        %v1473 = vsel %vm1346, %v1432, 0.0
        %1474 = vadd.xlane.f32.xlu0 %v1473
        %v1475 = vpop.xlane.xlu0 %1474
        %v1476 = vsel %vm1346, %v1434, 0.0
        %1477 = vadd.xlane.f32.xlu0 %v1476
        %v1478 = vpop.xlane.xlu0 %1477
        %v1479 = vsel %vm1346, %v1436, 0.0
        %1480 = vadd.xlane.f32.xlu0 %v1479
        %v1481 = vpop.xlane.xlu0 %1480
        %v1482 = vsel %vm1346, %v1438, 0.0
        %1483 = vadd.xlane.f32.xlu0 %v1482
        %v1484 = vpop.xlane.xlu0 %1483
        %v1485 = vsel %vm1346, %v1440, 0.0
        %1486 = vadd.xlane.f32.xlu0 %v1485
        %v1487 = vpop.xlane.xlu0 %1486
        %v1488 = vsel %vm1346, %v1442, 0.0
        %1489 = vadd.xlane.f32.xlu0 %v1488
        %v1490 = vpop.xlane.xlu0 %1489
        %v1491 = vrcp.pop %v1445
        %v1492 = vrcp.pop %v1448
        %v1493 = vrcp.pop %v1451
        %v1494 = vrcp.pop %v1454
        %v1495 = vrcp.pop %v1457
        %v1496 = vrcp.pop %v1460
        %v1497 = vrcp.pop %v1463
        %v1498 = vrcp.pop %v1466
        %v1499 = vrcp.pop %v1469
        %v1500 = vrcp.pop %v1472
        %v1501 = vrcp.pop %v1475
        %v1502 = vrcp.pop %v1478
        %v1503 = vrcp.pop %v1481
        %v1504 = vrcp.pop %v1484
        %v1505 = vrcp.pop %v1487
        %v1506 = vrcp.pop %v1490
        %v1507 = vmul.f32 %v1412, %v1491
        %v1508 = vmul.f32 %v1414, %v1492
        %v1509 = vmul.f32 %v1416, %v1493
        %v1510 = vmul.f32 %v1418, %v1494
        %v1511 = vmul.f32 %v1420, %v1495
        %v1512 = vmul.f32 %v1422, %v1496
        %v1513 = vmul.f32 %v1424, %v1497
        %v1514 = vmul.f32 %v1426, %v1498
        %v1515 = vmul.f32 %v1428, %v1499
        %v1516 = vmul.f32 %v1430, %v1500
        %v1517 = vmul.f32 %v1432, %v1501
        %v1518 = vmul.f32 %v1434, %v1502
        %v1519 = vmul.f32 %v1436, %v1503
        %v1520 = vmul.f32 %v1438, %v1504
        %v1521 = vmul.f32 %v1440, %v1505
        %v1522 = vmul.f32 %v1442, %v1506
        %v1524 = vsel %vm1346, %v1507, 0
        %1526 = vmatpush.msra.mxu0 0.0
        %1527 = vmatpush.msra.mxu0 0.0
        %1528 = vmatpush.msra.mxu0 0.0
        %1529 = vmatpush.msra.mxu0 0.0
        %1530 = vmatpush.msra.mxu0 0.0
        %1531 = vmatpush.msra.mxu0 0.0
        %1532 = vmatpush.msra.mxu0 0.0
        %1533 = vmatpush.msra.mxu0 0.0
        %1534 = vmatpush.msra.mxu0 0.0
        %1535 = vmatpush.msra.mxu0 0.0
        %1536 = vmatpush.msra.mxu0 0.0
        %1537 = vmatpush.msra.mxu0 0.0
        %1538 = vmatpush.msra.mxu0 0.0
        %1539 = vmatpush.msra.mxu0 0.0
        %1540 = vmatpush.msra.mxu0 0.0
        %1541 = vmatpush.msra.mxu0 %v851
        %1542 = vmatmul.f32.gmra.mxu0 %v1524
        %v1543 = vpop.f32.mrf.mxu0
        %v1544 = vadd.f32 0.0, %v1543
        %1545 = vdwg.mxu0
        %v1547 = vsel %vm1346, %v1508, 0
        %1549 = vmatpush.msra.mxu0 0.0
        %1550 = vmatpush.msra.mxu0 0.0
        %1551 = vmatpush.msra.mxu0 0.0
        %1552 = vmatpush.msra.mxu0 0.0
        %1553 = vmatpush.msra.mxu0 0.0
        %1554 = vmatpush.msra.mxu0 0.0
        %1555 = vmatpush.msra.mxu0 0.0
        %1556 = vmatpush.msra.mxu0 0.0
        %1557 = vmatpush.msra.mxu0 0.0
        %1558 = vmatpush.msra.mxu0 0.0
        %1559 = vmatpush.msra.mxu0 0.0
        %1560 = vmatpush.msra.mxu0 0.0
        %1561 = vmatpush.msra.mxu0 0.0
        %1562 = vmatpush.msra.mxu0 0.0
        %1563 = vmatpush.msra.mxu0 0.0
        %1564 = vmatpush.msra.mxu0 %v853
        %1565 = vmatmul.f32.gmra.mxu0 %v1547
        %v1566 = vpop.f32.mrf.mxu0
        %v1567 = vadd.f32 0.0, %v1566
        %1568 = vdwg.mxu0
        %v1570 = vsel %vm1346, %v1509, 0
        %1572 = vmatpush.msra.mxu0 0.0
        %1573 = vmatpush.msra.mxu0 0.0
        %1574 = vmatpush.msra.mxu0 0.0
        %1575 = vmatpush.msra.mxu0 0.0
        %1576 = vmatpush.msra.mxu0 0.0
        %1577 = vmatpush.msra.mxu0 0.0
        %1578 = vmatpush.msra.mxu0 0.0
        %1579 = vmatpush.msra.mxu0 0.0
        %1580 = vmatpush.msra.mxu0 0.0
        %1581 = vmatpush.msra.mxu0 0.0
        %1582 = vmatpush.msra.mxu0 0.0
        %1583 = vmatpush.msra.mxu0 0.0
        %1584 = vmatpush.msra.mxu0 0.0
        %1585 = vmatpush.msra.mxu0 0.0
        %1586 = vmatpush.msra.mxu0 0.0
        %1587 = vmatpush.msra.mxu0 %v856
        %1588 = vmatmul.f32.gmra.mxu0 %v1570
        %v1589 = vpop.f32.mrf.mxu0
        %v1590 = vadd.f32 0.0, %v1589
        %1591 = vdwg.mxu0
        %v1593 = vsel %vm1346, %v1510, 0
        %1595 = vmatpush.msra.mxu0 0.0
        %1596 = vmatpush.msra.mxu0 0.0
        %1597 = vmatpush.msra.mxu0 0.0
        %1598 = vmatpush.msra.mxu0 0.0
        %1599 = vmatpush.msra.mxu0 0.0
        %1600 = vmatpush.msra.mxu0 0.0
        %1601 = vmatpush.msra.mxu0 0.0
        %1602 = vmatpush.msra.mxu0 0.0
        %1603 = vmatpush.msra.mxu0 0.0
        %1604 = vmatpush.msra.mxu0 0.0
        %1605 = vmatpush.msra.mxu0 0.0
        %1606 = vmatpush.msra.mxu0 0.0
        %1607 = vmatpush.msra.mxu0 0.0
        %1608 = vmatpush.msra.mxu0 0.0
        %1609 = vmatpush.msra.mxu0 0.0
        %1610 = vmatpush.msra.mxu0 %v858
        %1611 = vmatmul.f32.gmra.mxu0 %v1593
        %v1612 = vpop.f32.mrf.mxu0
        %v1613 = vadd.f32 0.0, %v1612
        %1614 = vdwg.mxu0
        %v1616 = vsel %vm1346, %v1511, 0
        %1618 = vmatpush.msra.mxu0 0.0
        %1619 = vmatpush.msra.mxu0 0.0
        %1620 = vmatpush.msra.mxu0 0.0
        %1621 = vmatpush.msra.mxu0 0.0
        %1622 = vmatpush.msra.mxu0 0.0
        %1623 = vmatpush.msra.mxu0 0.0
        %1624 = vmatpush.msra.mxu0 0.0
        %1625 = vmatpush.msra.mxu0 0.0
        %1626 = vmatpush.msra.mxu0 0.0
        %1627 = vmatpush.msra.mxu0 0.0
        %1628 = vmatpush.msra.mxu0 0.0
        %1629 = vmatpush.msra.mxu0 0.0
        %1630 = vmatpush.msra.mxu0 0.0
        %1631 = vmatpush.msra.mxu0 0.0
        %1632 = vmatpush.msra.mxu0 0.0
        %1633 = vmatpush.msra.mxu0 %v861
        %1634 = vmatmul.f32.gmra.mxu0 %v1616
        %v1635 = vpop.f32.mrf.mxu0
        %v1636 = vadd.f32 0.0, %v1635
        %1637 = vdwg.mxu0
        %v1639 = vsel %vm1346, %v1512, 0
        %1641 = vmatpush.msra.mxu0 0.0
        %1642 = vmatpush.msra.mxu0 0.0
        %1643 = vmatpush.msra.mxu0 0.0
        %1644 = vmatpush.msra.mxu0 0.0
        %1645 = vmatpush.msra.mxu0 0.0
        %1646 = vmatpush.msra.mxu0 0.0
        %1647 = vmatpush.msra.mxu0 0.0
        %1648 = vmatpush.msra.mxu0 0.0
        %1649 = vmatpush.msra.mxu0 0.0
        %1650 = vmatpush.msra.mxu0 0.0
        %1651 = vmatpush.msra.mxu0 0.0
        %1652 = vmatpush.msra.mxu0 0.0
        %1653 = vmatpush.msra.mxu0 0.0
        %1654 = vmatpush.msra.mxu0 0.0
        %1655 = vmatpush.msra.mxu0 0.0
        %1656 = vmatpush.msra.mxu0 %v863
        %1657 = vmatmul.f32.gmra.mxu0 %v1639
        %v1658 = vpop.f32.mrf.mxu0
        %v1659 = vadd.f32 0.0, %v1658
        %1660 = vdwg.mxu0
        %v1662 = vsel %vm1346, %v1513, 0
        %1664 = vmatpush.msra.mxu0 0.0
        %1665 = vmatpush.msra.mxu0 0.0
        %1666 = vmatpush.msra.mxu0 0.0
        %1667 = vmatpush.msra.mxu0 0.0
        %1668 = vmatpush.msra.mxu0 0.0
        %1669 = vmatpush.msra.mxu0 0.0
        %1670 = vmatpush.msra.mxu0 0.0
        %1671 = vmatpush.msra.mxu0 0.0
        %1672 = vmatpush.msra.mxu0 0.0
        %1673 = vmatpush.msra.mxu0 0.0
        %1674 = vmatpush.msra.mxu0 0.0
        %1675 = vmatpush.msra.mxu0 0.0
        %1676 = vmatpush.msra.mxu0 0.0
        %1677 = vmatpush.msra.mxu0 0.0
        %1678 = vmatpush.msra.mxu0 0.0
        %1679 = vmatpush.msra.mxu0 %v866
        %1680 = vmatmul.f32.gmra.mxu0 %v1662
        %v1681 = vpop.f32.mrf.mxu0
        %v1682 = vadd.f32 0.0, %v1681
        %1683 = vdwg.mxu0
        %v1685 = vsel %vm1346, %v1514, 0
        %1687 = vmatpush.msra.mxu0 0.0
        %1688 = vmatpush.msra.mxu0 0.0
        %1689 = vmatpush.msra.mxu0 0.0
        %1690 = vmatpush.msra.mxu0 0.0
        %1691 = vmatpush.msra.mxu0 0.0
        %1692 = vmatpush.msra.mxu0 0.0
        %1693 = vmatpush.msra.mxu0 0.0
        %1694 = vmatpush.msra.mxu0 0.0
        %1695 = vmatpush.msra.mxu0 0.0
        %1696 = vmatpush.msra.mxu0 0.0
        %1697 = vmatpush.msra.mxu0 0.0
        %1698 = vmatpush.msra.mxu0 0.0
        %1699 = vmatpush.msra.mxu0 0.0
        %1700 = vmatpush.msra.mxu0 0.0
        %1701 = vmatpush.msra.mxu0 0.0
        %1702 = vmatpush.msra.mxu0 %v868
        %1703 = vmatmul.f32.gmra.mxu0 %v1685
        %v1704 = vpop.f32.mrf.mxu0
        %v1705 = vadd.f32 0.0, %v1704
        %1706 = vdwg.mxu0
        %v1708 = vsel %vm1346, %v1515, 0
        %1710 = vmatpush.msra.mxu0 0.0
        %1711 = vmatpush.msra.mxu0 0.0
        %1712 = vmatpush.msra.mxu0 0.0
        %1713 = vmatpush.msra.mxu0 0.0
        %1714 = vmatpush.msra.mxu0 0.0
        %1715 = vmatpush.msra.mxu0 0.0
        %1716 = vmatpush.msra.mxu0 0.0
        %1717 = vmatpush.msra.mxu0 0.0
        %1718 = vmatpush.msra.mxu0 0.0
        %1719 = vmatpush.msra.mxu0 0.0
        %1720 = vmatpush.msra.mxu0 0.0
        %1721 = vmatpush.msra.mxu0 0.0
        %1722 = vmatpush.msra.mxu0 0.0
        %1723 = vmatpush.msra.mxu0 0.0
        %1724 = vmatpush.msra.mxu0 0.0
        %1725 = vmatpush.msra.mxu0 %v871
        %1726 = vmatmul.f32.gmra.mxu0 %v1708
        %v1727 = vpop.f32.mrf.mxu0
        %v1728 = vadd.f32 0.0, %v1727
        %1729 = vdwg.mxu0
        %v1731 = vsel %vm1346, %v1516, 0
        %1733 = vmatpush.msra.mxu0 0.0
        %1734 = vmatpush.msra.mxu0 0.0
        %1735 = vmatpush.msra.mxu0 0.0
        %1736 = vmatpush.msra.mxu0 0.0
        %1737 = vmatpush.msra.mxu0 0.0
        %1738 = vmatpush.msra.mxu0 0.0
        %1739 = vmatpush.msra.mxu0 0.0
        %1740 = vmatpush.msra.mxu0 0.0
        %1741 = vmatpush.msra.mxu0 0.0
        %1742 = vmatpush.msra.mxu0 0.0
        %1743 = vmatpush.msra.mxu0 0.0
        %1744 = vmatpush.msra.mxu0 0.0
        %1745 = vmatpush.msra.mxu0 0.0
        %1746 = vmatpush.msra.mxu0 0.0
        %1747 = vmatpush.msra.mxu0 0.0
        %1748 = vmatpush.msra.mxu0 %v873
        %1749 = vmatmul.f32.gmra.mxu0 %v1731
        %v1750 = vpop.f32.mrf.mxu0
        %v1751 = vadd.f32 0.0, %v1750
        %1752 = vdwg.mxu0
        %v1754 = vsel %vm1346, %v1517, 0
        %1756 = vmatpush.msra.mxu0 0.0
        %1757 = vmatpush.msra.mxu0 0.0
        %1758 = vmatpush.msra.mxu0 0.0
        %1759 = vmatpush.msra.mxu0 0.0
        %1760 = vmatpush.msra.mxu0 0.0
        %1761 = vmatpush.msra.mxu0 0.0
        %1762 = vmatpush.msra.mxu0 0.0
        %1763 = vmatpush.msra.mxu0 0.0
        %1764 = vmatpush.msra.mxu0 0.0
        %1765 = vmatpush.msra.mxu0 0.0
        %1766 = vmatpush.msra.mxu0 0.0
        %1767 = vmatpush.msra.mxu0 0.0
        %1768 = vmatpush.msra.mxu0 0.0
        %1769 = vmatpush.msra.mxu0 0.0
        %1770 = vmatpush.msra.mxu0 0.0
        %1771 = vmatpush.msra.mxu0 %v876
        %1772 = vmatmul.f32.gmra.mxu0 %v1754
        %v1773 = vpop.f32.mrf.mxu0
        %v1774 = vadd.f32 0.0, %v1773
        %1775 = vdwg.mxu0
        %v1777 = vsel %vm1346, %v1518, 0
        %1779 = vmatpush.msra.mxu0 0.0
        %1780 = vmatpush.msra.mxu0 0.0
        %1781 = vmatpush.msra.mxu0 0.0
        %1782 = vmatpush.msra.mxu0 0.0
        %1783 = vmatpush.msra.mxu0 0.0
        %1784 = vmatpush.msra.mxu0 0.0
        %1785 = vmatpush.msra.mxu0 0.0
        %1786 = vmatpush.msra.mxu0 0.0
        %1787 = vmatpush.msra.mxu0 0.0
        %1788 = vmatpush.msra.mxu0 0.0
        %1789 = vmatpush.msra.mxu0 0.0
        %1790 = vmatpush.msra.mxu0 0.0
        %1791 = vmatpush.msra.mxu0 0.0
        %1792 = vmatpush.msra.mxu0 0.0
        %1793 = vmatpush.msra.mxu0 0.0
        %1794 = vmatpush.msra.mxu0 %v878
        %1795 = vmatmul.f32.gmra.mxu0 %v1777
        %v1796 = vpop.f32.mrf.mxu0
        %v1797 = vadd.f32 0.0, %v1796
        %1798 = vdwg.mxu0
        %v1800 = vsel %vm1346, %v1519, 0
        %1802 = vmatpush.msra.mxu0 0.0
        %1803 = vmatpush.msra.mxu0 0.0
        %1804 = vmatpush.msra.mxu0 0.0
        %1805 = vmatpush.msra.mxu0 0.0
        %1806 = vmatpush.msra.mxu0 0.0
        %1807 = vmatpush.msra.mxu0 0.0
        %1808 = vmatpush.msra.mxu0 0.0
        %1809 = vmatpush.msra.mxu0 0.0
        %1810 = vmatpush.msra.mxu0 0.0
        %1811 = vmatpush.msra.mxu0 0.0
        %1812 = vmatpush.msra.mxu0 0.0
        %1813 = vmatpush.msra.mxu0 0.0
        %1814 = vmatpush.msra.mxu0 0.0
        %1815 = vmatpush.msra.mxu0 0.0
        %1816 = vmatpush.msra.mxu0 0.0
        %1817 = vmatpush.msra.mxu0 %v881
        %1818 = vmatmul.f32.gmra.mxu0 %v1800
        %v1819 = vpop.f32.mrf.mxu0
        %v1820 = vadd.f32 0.0, %v1819
        %1821 = vdwg.mxu0
        %v1823 = vsel %vm1346, %v1520, 0
        %1825 = vmatpush.msra.mxu0 0.0
        %1826 = vmatpush.msra.mxu0 0.0
        %1827 = vmatpush.msra.mxu0 0.0
        %1828 = vmatpush.msra.mxu0 0.0
        %1829 = vmatpush.msra.mxu0 0.0
        %1830 = vmatpush.msra.mxu0 0.0
        %1831 = vmatpush.msra.mxu0 0.0
        %1832 = vmatpush.msra.mxu0 0.0
        %1833 = vmatpush.msra.mxu0 0.0
        %1834 = vmatpush.msra.mxu0 0.0
        %1835 = vmatpush.msra.mxu0 0.0
        %1836 = vmatpush.msra.mxu0 0.0
        %1837 = vmatpush.msra.mxu0 0.0
        %1838 = vmatpush.msra.mxu0 0.0
        %1839 = vmatpush.msra.mxu0 0.0
        %1840 = vmatpush.msra.mxu0 %v883
        %1841 = vmatmul.f32.gmra.mxu0 %v1823
        %v1842 = vpop.f32.mrf.mxu0
        %v1843 = vadd.f32 0.0, %v1842
        %1844 = vdwg.mxu0
        %v1846 = vsel %vm1346, %v1521, 0
        %1848 = vmatpush.msra.mxu0 0.0
        %1849 = vmatpush.msra.mxu0 0.0
        %1850 = vmatpush.msra.mxu0 0.0
        %1851 = vmatpush.msra.mxu0 0.0
        %1852 = vmatpush.msra.mxu0 0.0
        %1853 = vmatpush.msra.mxu0 0.0
        %1854 = vmatpush.msra.mxu0 0.0
        %1855 = vmatpush.msra.mxu0 0.0
        %1856 = vmatpush.msra.mxu0 0.0
        %1857 = vmatpush.msra.mxu0 0.0
        %1858 = vmatpush.msra.mxu0 0.0
        %1859 = vmatpush.msra.mxu0 0.0
        %1860 = vmatpush.msra.mxu0 0.0
        %1861 = vmatpush.msra.mxu0 0.0
        %1862 = vmatpush.msra.mxu0 0.0
        %1863 = vmatpush.msra.mxu0 %v886
        %1864 = vmatmul.f32.gmra.mxu0 %v1846
        %v1865 = vpop.f32.mrf.mxu0
        %v1866 = vadd.f32 0.0, %v1865
        %1867 = vdwg.mxu0
        %v1869 = vsel %vm1346, %v1522, 0
        %1871 = vmatpush.msra.mxu0 0.0
        %1872 = vmatpush.msra.mxu0 0.0
        %1873 = vmatpush.msra.mxu0 0.0
        %1874 = vmatpush.msra.mxu0 0.0
        %1875 = vmatpush.msra.mxu0 0.0
        %1876 = vmatpush.msra.mxu0 0.0
        %1877 = vmatpush.msra.mxu0 0.0
        %1878 = vmatpush.msra.mxu0 0.0
        %1879 = vmatpush.msra.mxu0 0.0
        %1880 = vmatpush.msra.mxu0 0.0
        %1881 = vmatpush.msra.mxu0 0.0
        %1882 = vmatpush.msra.mxu0 0.0
        %1883 = vmatpush.msra.mxu0 0.0
        %1884 = vmatpush.msra.mxu0 0.0
        %1885 = vmatpush.msra.mxu0 0.0
        %1886 = vmatpush.msra.mxu0 %v888
        %1887 = vmatmul.f32.gmra.mxu0 %v1869
        %v1888 = vpop.f32.mrf.mxu0
        %v1889 = vadd.f32 0.0, %v1888
        %1890 = vdwg.mxu0
        %1891 = vst.msk [vmem:[%s139] sm:$0xff] %vm893, %v1544
        %1892 = vst.msk [vmem:[%s139 + $0x8] sm:$0xff] %vm893, %v1567
        %1893 = vst.msk [vmem:[%s139 + $0x10] sm:$0xff] %vm893, %v1590
        %1894 = vst.msk [vmem:[%s139 + $0x18] sm:$0xff] %vm893, %v1613
        %1895 = vst.msk [vmem:[%s139 + $0x20] sm:$0xff] %vm893, %v1636
        %1896 = vst.msk [vmem:[%s139 + $0x28] sm:$0xff] %vm893, %v1659
        %1897 = vst.msk [vmem:[%s139 + $0x30] sm:$0xff] %vm893, %v1682
        %1898 = vst.msk [vmem:[%s139 + $0x38] sm:$0xff] %vm893, %v1705
        %1899 = vst.msk [vmem:[%s139 + $0x40] sm:$0xff] %vm893, %v1728
        %1900 = vst.msk [vmem:[%s139 + $0x48] sm:$0xff] %vm893, %v1751
        %1901 = vst.msk [vmem:[%s139 + $0x50] sm:$0xff] %vm893, %v1774
        %1902 = vst.msk [vmem:[%s139 + $0x58] sm:$0xff] %vm893, %v1797
        %1903 = vst.msk [vmem:[%s139 + $0x60] sm:$0xff] %vm893, %v1820
        %1904 = vst.msk [vmem:[%s139 + $0x68] sm:$0xff] %vm893, %v1843
        %1905 = vst.msk [vmem:[%s139 + $0x70] sm:$0xff] %vm893, %v1866
        %1906 = vst.msk [vmem:[%s139 + $0x78] sm:$0xff] %vm893, %v1889
        %s1907 = sand.u32 %s71, 1
        %s1908 = scalar_lea.sflag [#allocation3], %s1907
        %s1909 = sand.u32 %s71, 1
        %s1910 = smul.addr %s1909, 128
        %s1911 = scalar_lea.vmem [#allocation2], %s1910
        // Predicated region
        $region29: #{tpu_custom_call.1} parent=27 // pred_check
          %p1912 = pneg %p81
        $region30: #{tpu_custom_call.1} parent=27 // pred_check_branch
          %1914 = sbr.rel (%p1912) target = $region32
        $region31: #{tpu_custom_call.1} parent=27 // pred_region
          %s1915 = smul.u32 16, %s16
          %1917 = vsyncadd %s1908, 0
          %s1918 = smul.addr %s1915, 8
          %s1919 = scalar_lea.hbm %s2, %s1918
          %s1920 = sshll.u32 %s1911, 4
          %s1921 = int_to_ptr.vmem [resolvable:$true] %s1920
          %s1922 = sshll.u32 %s1919, 4
          %s1923 = int_to_ptr.hbm [resolvable:$true] %s1922
          %1928 = dma.vmem_to_hbm [thread:$0]  %s1921, 2048, %s1923, %s1908, 128, 128, 8
        $region32: #{tpu_custom_call.1} parent=27 // pred_fallthru
          _
      $region28: #{tpu_custom_call.1} parent=5 // pred_fallthru
        _
      %p1929 = scmp.le.s32.totalorder 2, %s11
      // Predicated region
      $region33: #{tpu_custom_call.1} parent=5 // pred_check
        %p1930 = pneg %p1929
      $region34: #{tpu_custom_call.1} parent=5 // pred_check_branch
        %1932 = sbr.rel (%p1930) target = $region36
      $region35: #{tpu_custom_call.1} parent=5 // pred_region
        %s1933 = ssub.s32 %s11, 2
        // Predicated region
        $region37: #{tpu_custom_call.1} parent=35 // pred_check
          %p1934 = pneg %p87
        $region38: #{tpu_custom_call.1} parent=35 // pred_check_branch
          %1936 = sbr.rel (%p1934) target = $region40
        $region39: #{tpu_custom_call.1} parent=35 // pred_region
          %s1937 = sand.u32 %s72, 1
          %s1938 = scalar_lea.sflag [#allocation3], %s1937
          %s1939 = sand.u32 %s72, 1
          %s1940 = smul.addr %s1939, 128
          %s1941 = scalar_lea.vmem [#allocation2], %s1940
          %1943 = dma.done %s1938, 2048
        $region40: #{tpu_custom_call.1} parent=35 // pred_fallthru
          _
      $region36: #{tpu_custom_call.1} parent=5 // pred_fallthru
        _
    $region6: #{tpu_custom_call.1} parent=1 // loop_footer
      %s15 = sadd.s32 1, %s11
    $region7: #{tpu_custom_call.1} parent=1 // loop_footer_branch
      %10 = sbr.rel target = $region3
    $region8: #{tpu_custom_call.1} parent=1 // loop_exit
      _
    %1944 = vsyncpa [#allocation3], 1
    %s1945 = scalar_lea.sflag [#allocation3], 1
    %1946 = vsyncpa %s1945, 1

</llo_original>
